<compile_context>
chip_gen: v7x
topology: tpu7x:2x2x1
jax: 0.10.0
libtpu: 0.0.40
codegen_flags: <defaults>
</compile_context>

<pallas_src>
import jax
import jax.numpy as jnp
from jax import lax
from jax.experimental import pallas as pl
from jax.experimental.pallas import tpu as pltpu

B, CIN, COUT = 2, 4, 8
H = W = 16
HO = WO = 8                    # both branches downsample spatially by 2
WC_IN = W * CIN                # 64  lanes for Cin-channel activations
WC_OUT = W * COUT              # 128 lanes for Cout-channel activations
WOC = WO * COUT                # 64  lanes for the output
NEG = -1e30                    # finite stand-in for MaxPool -inf padding (only feeds max)
BN_EPS = 1e-5


def _xception_exit_kernel(x_ref, m1_ref, b1_ref, k1_ref, b2_ref,
                          k2_ref, b3_ref, sel_ref, o_ref, p_ref, y_ref):
  """One batch element per grid step.

  x_ref  : (H, W*CIN)          input, W and C flattened into lanes
  m1_ref : (W*CIN, WO*COUT)    branch-1: even-col select * conv1x1 * BN1 scale
  b1_ref : (1, WO*COUT)        BN1 shift (tiled over WO)
  k1_ref : (3, W*CIN, W*CIN)   sepconv#1 banded mats (3x3 dw + 1x1 pw + BN2 scale)
  b2_ref : (1, W*CIN)          BN2 shift (tiled over W)
  k2_ref : (3, W*CIN, W*COUT)  sepconv#2 banded mats (+ BN3 scale)
  b3_ref : (1, W*COUT)         BN3 shift (tiled over W)
  sel_ref: (W*COUT, WO*COUT)   stride-2 column selector for the maxpool
  o_ref  : (HO, WO*COUT)       output
  p_ref  : (H+2, W*CIN)        zero-row-padded sepconv input scratch
  y_ref  : (H, W*COUT)         pre-pool activations (lane-dense)
  """
  f32 = jnp.float32

  # Zero only the two padding rows (tiny, safe under "parallel" batch sharding).
  zrow = jnp.zeros((1, WC_IN), f32)
  p_ref[0:1, :] = zrow
  p_ref[H + 1:H + 2, :] = zrow

  def sepconv(k_ref, bias):
    """Depthwise 3x3 + pointwise 1x1 (+ BN scale) of the (H, W*CIN) activation
    held in p_ref rows 1..H, as 3 banded matmuls (one per 3x3 row tap)."""
    y = jnp.dot(p_ref[0:H, :], k_ref[0], preferred_element_type=f32)          # rows h-1
    y = y + jnp.dot(p_ref[1:H + 1, :], k_ref[1], preferred_element_type=f32)  # rows h
    y = y + jnp.dot(p_ref[2:H + 2, :], k_ref[2], preferred_element_type=f32)  # rows h+1
    return y + bias

  # ---------- branch 2 / stage 1: ReLU -> SepConv(Cin->Cin) -> BN -> ReLU
  p_ref[1:H + 1, :] = jnp.maximum(x_ref[...], 0.0)
  a2 = jnp.maximum(sepconv(k1_ref, b2_ref[...]), 0.0)            # (H, W*CIN)

  # ---------- branch 2 / stage 2: SepConv(Cin->Cout) -> BN
  p_ref[1:H + 1, :] = a2
  y_ref[...] = sepconv(k2_ref, b3_ref[...])                      # (H, W*COUT)

  # ---------- branch 2 / MaxPool2d(kernel=3, stride=2, padding=1)
  r_even = y_ref[pl.ds(0, HO, stride=2), :]                      # rows 0,2,...,14
  r_odd = y_ref[pl.ds(1, HO, stride=2), :]                       # rows 1,3,...,15
  rows = lax.broadcasted_iota(jnp.int32, (HO, WC_OUT), 0)
  r_prev = jnp.where(rows == 0, NEG,
                     pltpu.roll(r_odd, shift=1, axis=0))         # rows -1,1,...,13
  hpool = jnp.maximum(jnp.maximum(r_prev, r_even), r_odd)        # pooled over H

  lanes = lax.broadcasted_iota(jnp.int32, (HO, WC_OUT), 1)
  w_left = jnp.where(lanes < COUT, NEG,
                     pltpu.roll(hpool, shift=COUT, axis=1))              # col w-1
  w_right = jnp.where(lanes >= (W - 1) * COUT, NEG,
                      pltpu.roll(hpool, shift=WC_OUT - COUT, axis=1))    # col w+1
  wpool = jnp.maximum(jnp.maximum(w_left, hpool), w_right)       # pooled over W (all cols)
  pooled = jnp.dot(wpool, sel_ref[...], preferred_element_type=f32)  # keep even cols

  # ---------- branch 1: 1x1 stride-2 conv + BN (selection & scale fused in m1)
  x_even = x_ref[pl.ds(0, HO, stride=2), :]                      # rows 0,2,...,14
  b1 = jnp.dot(x_even, m1_ref[...], preferred_element_type=f32) + b1_ref[...]

  o_ref[...] = (b1 + pooled).astype(o_ref.dtype)


def fold_params(p):
  """Host-side weight prep: fold BN scales into conv weights, flatten W into
  the lane dim (banded / block matrices), tile BN shifts across lanes."""
  f32 = jnp.float32
  bn1s, bn1b = p["bn1_scale"].reshape(-1), p["bn1_shift"].reshape(-1)
  bn2s, bn2b = p["bn2_scale"].reshape(-1), p["bn2_shift"].reshape(-1)
  bn3s, bn3b = p["bn3_scale"].reshape(-1), p["bn3_shift"].reshape(-1)

  def block_expand(colsel, blk):
    # colsel: (P, Q), blk: (ci, co) -> (P*ci, Q*co); block (p, q) = colsel[p,q]*blk
    P, Q = colsel.shape
    ci, co = blk.shape
    return jnp.einsum("pq,cd->pcqd", colsel, blk).reshape(P * ci, Q * co)

  even = (jnp.arange(W)[:, None] == 2 * jnp.arange(WO)[None, :]).astype(f32)  # (W, WO)

  def sepconv_mats(dw, pw_scaled):
    # dw: (3,3,CIN), pw_scaled: (CIN, CO).  For each row tap ki build the banded
    # (W*CIN, W*CO) matrix combining the 3 column taps, the pointwise 1x1 conv
    # and the folded BN scale:  K[ki][w'*CIN+c, w*CO+d] = dw[ki,kj,c]*pw[c,d]
    # where kj = w' - w + 1.
    wg = jnp.arange(W)
    mats = []
    for ki in range(3):
      k = jnp.zeros((W * CIN, W * pw_scaled.shape[1]), f32)
      for kj in range(3):
        band = (wg[:, None] == wg[None, :] + (kj - 1)).astype(f32)
        k = k + block_expand(band, dw[ki, kj, :][:, None] * pw_scaled)
      mats.append(k)
    return jnp.stack(mats, axis=0)

  return {
      "m1": block_expand(even, p["w1"] * bn1s[None, :]),        # (W*CIN, WO*COUT)
      "b1": jnp.tile(bn1b, (WO,)).reshape(1, WOC),
      "k1": sepconv_mats(p["dw1"], p["pw1"] * bn2s[None, :]),   # (3, W*CIN, W*CIN)
      "b2": jnp.tile(bn2b, (W,)).reshape(1, WC_IN),
      "k2": sepconv_mats(p["dw2"], p["pw2"] * bn3s[None, :]),   # (3, W*CIN, W*COUT)
      "b3": jnp.tile(bn3b, (W,)).reshape(1, WC_OUT),
      "sel": block_expand(even, jnp.eye(COUT, dtype=f32)),      # (W*COUT, WO*COUT)
  }


def xception_exit_forward(x, fp):
  """x: (B, H, W, CIN) float32 NHWC -> (B, HO, WO, COUT) float32 NHWC."""
  xf = x.reshape(B, H, WC_IN)            # free row-major reshape: lanes = W*CIN
  in_specs = [
      pl.BlockSpec((None, H, WC_IN), lambda b: (b, 0, 0)),        # x
      pl.BlockSpec((WC_IN, WOC), lambda b: (0, 0)),               # m1
      pl.BlockSpec((1, WOC), lambda b: (0, 0)),                   # b1
      pl.BlockSpec((3, WC_IN, WC_IN), lambda b: (0, 0, 0)),       # k1
      pl.BlockSpec((1, WC_IN), lambda b: (0, 0)),                 # b2
      pl.BlockSpec((3, WC_IN, WC_OUT), lambda b: (0, 0, 0)),      # k2
      pl.BlockSpec((1, WC_OUT), lambda b: (0, 0)),                # b3
      pl.BlockSpec((WC_OUT, WOC), lambda b: (0, 0)),              # sel
  ]
  out = pl.pallas_call(
      _xception_exit_kernel,
      out_shape=jax.ShapeDtypeStruct((B, HO, WOC), jnp.float32),
      grid_spec=pltpu.PrefetchScalarGridSpec(
          num_scalar_prefetch=0,
          grid=(B,),
          in_specs=in_specs,
          out_specs=pl.BlockSpec((None, HO, WOC), lambda b: (b, 0, 0)),
          scratch_shapes=[
              pltpu.VMEM((H + 2, WC_IN), jnp.float32),   # zero-row-padded sepconv input
              pltpu.VMEM((H, WC_OUT), jnp.float32),      # pre-pool activations
          ],
      ),
      compiler_params=pltpu.CompilerParams(
          dimension_semantics=("parallel",)),   # batch axis -> v7x dual TC; neutral v5e/v6e
  )(xf, fp["m1"], fp["b1"], fp["k1"], fp["b2"], fp["k2"], fp["b3"], fp["sel"])
  return out.reshape(B, HO, WO, COUT)


def init_params(key):
  ks = jax.random.split(key, 17)

  def w(k, shape, scale=0.3):
    return (scale * jax.random.normal(k, shape)).astype(jnp.float32)

  def bn(kg, kb, km, kv, c):
    gamma = 1.0 + 0.1 * jax.random.normal(kg, (c,))
    beta = 0.1 * jax.random.normal(kb, (c,))
    mean = 0.1 * jax.random.normal(km, (c,))
    var = jax.random.uniform(kv, (c,), minval=0.5, maxval=1.5)
    scale = gamma * lax.rsqrt(var + BN_EPS)
    shift = beta - mean * scale
    return (scale.reshape(1, c).astype(jnp.float32),
            shift.reshape(1, c).astype(jnp.float32))

  p = {}
  p["w1"] = w(ks[0], (CIN, COUT))     # 1x1 stride-2 conv  (Cin -> Cout)
  p["dw1"] = w(ks[1], (3, 3, CIN))    # depthwise 3x3, SeparableConv2d #1
  p["pw1"] = w(ks[2], (CIN, CIN))     # pointwise 1x1, SeparableConv2d #1
  p["dw2"] = w(ks[3], (3, 3, CIN))    # depthwise 3x3, SeparableConv2d #2
  p["pw2"] = w(ks[4], (CIN, COUT))    # pointwise 1x1, SeparableConv2d #2
  p["bn1_scale"], p["bn1_shift"] = bn(ks[5], ks[6], ks[7], ks[8], COUT)
  p["bn2_scale"], p["bn2_shift"] = bn(ks[9], ks[10], ks[11], ks[12], CIN)
  p["bn3_scale"], p["bn3_shift"] = bn(ks[13], ks[14], ks[15], ks[16], COUT)
  return p


def reference_forward(x, params):
  """Pure-JAX reference with identical NHWC semantics."""
  w1, dw1, pw1 = params["w1"], params["dw1"], params["pw1"]
  dw2, pw2 = params["dw2"], params["pw2"]
  bn1s, bn1b = params["bn1_scale"][0], params["bn1_shift"][0]
  bn2s, bn2b = params["bn2_scale"][0], params["bn2_shift"][0]
  bn3s, bn3b = params["bn3_scale"][0], params["bn3_shift"][0]

  def dwconv3x3(t, wk):               # t: (B,H,W,C), wk: (3,3,C), pad=1
    tp = jnp.pad(t, ((0, 0), (1, 1), (1, 1), (0, 0)))
    out = jnp.zeros_like(t)
    for ki in range(3):
      for kj in range(3):
        out = out + tp[:, ki:ki + H, kj:kj + W, :] * wk[ki, kj, :]
    return out

  # branch 1
  b1 = jnp.einsum("bhwc,cd->bhwd", x[:, ::2, ::2, :], w1) * bn1s + bn1b
  # branch 2
  y = jnp.maximum(x, 0.0)
  y = jnp.einsum("bhwc,cd->bhwd", dwconv3x3(y, dw1), pw1) * bn2s + bn2b
  y = jnp.maximum(y, 0.0)
  y = jnp.einsum("bhwc,cd->bhwd", dwconv3x3(y, dw2), pw2) * bn3s + bn3b
  yp = jnp.pad(y, ((0, 0), (1, 1), (1, 1), (0, 0)),
               constant_values=-jnp.inf)
  pooled = jnp.full((B, HO, WO, COUT), -jnp.inf, jnp.float32)
  for ki in range(3):
    for kj in range(3):
      pooled = jnp.maximum(
          pooled, yp[:, ki:ki + 2 * HO:2, kj:kj + 2 * WO:2, :])
  return b1 + pooled


if __name__ == "__main__":
  key = jax.random.PRNGKey(0)
  kx, kp = jax.random.split(key)
  x = jax.random.normal(kx, (B, H, W, CIN), dtype=jnp.float32)
  params = init_params(kp)
  folded = fold_params(params)

  out = xception_exit_forward(x, folded)
  out = jax.block_until_ready(out)

  ref = reference_forward(x, params)
  err = float(jnp.max(jnp.abs(out - ref)))
  if not (err < 1e-2):
    raise SystemExit(f"Pallas kernel mismatch vs JAX reference: max_err={err}")
  print("KERNEL_OK")
</pallas_src>

<mosaic_0001>
module attributes {stable_mosaic.version = 11 : i64} {
  func.func @_xception_exit_kernel(%arg0: i32, %arg1: memref<1x16x64xf32, #tpu.memory_space<vmem>>, %arg2: memref<64x64xf32, #tpu.memory_space<vmem>>, %arg3: memref<1x64xf32, #tpu.memory_space<vmem>>, %arg4: memref<3x64x64xf32, #tpu.memory_space<vmem>>, %arg5: memref<1x64xf32, #tpu.memory_space<vmem>>, %arg6: memref<3x64x128xf32, #tpu.memory_space<vmem>>, %arg7: memref<1x128xf32, #tpu.memory_space<vmem>>, %arg8: memref<128x64xf32, #tpu.memory_space<vmem>>, %arg9: memref<1x8x64xf32, #tpu.memory_space<vmem>>, %arg10: memref<18x64xf32, #tpu.memory_space<vmem>>, %arg11: memref<16x128xf32, #tpu.memory_space<vmem>>) attributes {dimension_semantics = [#tpu.dimension_semantics<parallel>], iteration_bounds = array<i64: 2>, scalar_prefetch = 0 : i64, scratch_operands = 2 : i64, tpu.core_type = #tpu.core_type<tc>, window_params = [{transform_indices = @transform_0, window_bounds = array<i64: 1, 16, 64>}, {pipeline_mode = #tpu.pipeline_mode<synchronous>, transform_indices = @transform_1, window_bounds = array<i64: 64, 64>}, {pipeline_mode = #tpu.pipeline_mode<synchronous>, transform_indices = @transform_2, window_bounds = array<i64: 1, 64>}, {pipeline_mode = #tpu.pipeline_mode<synchronous>, transform_indices = @transform_3, window_bounds = array<i64: 3, 64, 64>}, {pipeline_mode = #tpu.pipeline_mode<synchronous>, transform_indices = @transform_4, window_bounds = array<i64: 1, 64>}, {pipeline_mode = #tpu.pipeline_mode<synchronous>, transform_indices = @transform_5, window_bounds = array<i64: 3, 64, 128>}, {pipeline_mode = #tpu.pipeline_mode<synchronous>, transform_indices = @transform_6, window_bounds = array<i64: 1, 128>}, {pipeline_mode = #tpu.pipeline_mode<synchronous>, transform_indices = @transform_7, window_bounds = array<i64: 128, 64>}, {transform_indices = @transform_8, window_bounds = array<i64: 1, 8, 64>}]} {
    %cst = arith.constant 0.000000e+00 : f32
    %0 = vector.broadcast %cst : f32 to vector<1x64xf32>
    %c0 = arith.constant 0 : index
    %c0_0 = arith.constant 0 : index
    %1 = vector.load %arg10[%c0, %c0_0] : memref<18x64xf32, #tpu.memory_space<vmem>>, vector<1x64xf32>
    tpu.vector_store %arg10[%c0, %c0_0], %0 {strides = array<i32>} : memref<18x64xf32, #tpu.memory_space<vmem>>, vector<1x64xf32>,
    %c17 = arith.constant 17 : index
    %c0_1 = arith.constant 0 : index
    %2 = vector.load %arg10[%c17, %c0_1] : memref<18x64xf32, #tpu.memory_space<vmem>>, vector<1x64xf32>
    tpu.vector_store %arg10[%c17, %c0_1], %0 {strides = array<i32>} : memref<18x64xf32, #tpu.memory_space<vmem>>, vector<1x64xf32>,
    %c0_2 = arith.constant 0 : index
    %c0_3 = arith.constant 0 : index
    %c0_4 = arith.constant 0 : index
    %3 = vector.load %arg1[%c0_2, %c0_3, %c0_4] : memref<1x16x64xf32, #tpu.memory_space<vmem>>, vector<1x16x64xf32>
    %4 = vector.shape_cast %3 : vector<1x16x64xf32> to vector<16x64xf32>
    %cst_5 = arith.constant 0.000000e+00 : f32
    %5 = vector.broadcast %cst_5 : f32 to vector<16x64xf32>
    %6 = arith.maximumf %4, %5 : vector<16x64xf32>
    %c1 = arith.constant 1 : index
    %c0_6 = arith.constant 0 : index
    %7 = vector.load %arg10[%c1, %c0_6] : memref<18x64xf32, #tpu.memory_space<vmem>>, vector<16x64xf32>
    tpu.vector_store %arg10[%c1, %c0_6], %6 {strides = array<i32>} : memref<18x64xf32, #tpu.memory_space<vmem>>, vector<16x64xf32>,
    %c0_7 = arith.constant 0 : index
    %c0_8 = arith.constant 0 : index
    %8 = vector.load %arg5[%c0_7, %c0_8] : memref<1x64xf32, #tpu.memory_space<vmem>>, vector<1x64xf32>
    %c0_9 = arith.constant 0 : index
    %c0_10 = arith.constant 0 : index
    %9 = vector.load %arg10[%c0_9, %c0_10] : memref<18x64xf32, #tpu.memory_space<vmem>>, vector<16x64xf32>
    %c0_11 = arith.constant 0 : index
    %c0_12 = arith.constant 0 : index
    %c0_13 = arith.constant 0 : index
    %10 = vector.load %arg4[%c0_11, %c0_12, %c0_13] : memref<3x64x64xf32, #tpu.memory_space<vmem>>, vector<1x64x64xf32>
    %11 = vector.shape_cast %10 : vector<1x64x64xf32> to vector<64x64xf32>
    %cst_14 = arith.constant dense<0.000000e+00> : vector<16x64xf32>
    %12 = tpu.matmul %9, %11, %cst_14 {dimension_numbers = #tpu.dot_dimension_numbers<[1], [0], [0], [1], [0, 0, 1, 1], [], []>} : vector<16x64xf32>, vector<64x64xf32>, vector<16x64xf32> -> vector<16x64xf32>
    %c1_15 = arith.constant 1 : index
    %c0_16 = arith.constant 0 : index
    %13 = vector.load %arg10[%c1_15, %c0_16] : memref<18x64xf32, #tpu.memory_space<vmem>>, vector<16x64xf32>
    %c1_17 = arith.constant 1 : index
    %c0_18 = arith.constant 0 : index
    %c0_19 = arith.constant 0 : index
    %14 = vector.load %arg4[%c1_17, %c0_18, %c0_19] : memref<3x64x64xf32, #tpu.memory_space<vmem>>, vector<1x64x64xf32>
    %15 = vector.shape_cast %14 : vector<1x64x64xf32> to vector<64x64xf32>
    %cst_20 = arith.constant dense<0.000000e+00> : vector<16x64xf32>
    %16 = tpu.matmul %13, %15, %cst_20 {dimension_numbers = #tpu.dot_dimension_numbers<[1], [0], [0], [1], [0, 0, 1, 1], [], []>} : vector<16x64xf32>, vector<64x64xf32>, vector<16x64xf32> -> vector<16x64xf32>
    %17 = arith.addf %12, %16 : vector<16x64xf32>
    %c2 = arith.constant 2 : index
    %c0_21 = arith.constant 0 : index
    %18 = vector.load %arg10[%c2, %c0_21] : memref<18x64xf32, #tpu.memory_space<vmem>>, vector<16x64xf32>
    %c2_22 = arith.constant 2 : index
    %c0_23 = arith.constant 0 : index
    %c0_24 = arith.constant 0 : index
    %19 = vector.load %arg4[%c2_22, %c0_23, %c0_24] : memref<3x64x64xf32, #tpu.memory_space<vmem>>, vector<1x64x64xf32>
    %20 = vector.shape_cast %19 : vector<1x64x64xf32> to vector<64x64xf32>
    %cst_25 = arith.constant dense<0.000000e+00> : vector<16x64xf32>
    %21 = tpu.matmul %18, %20, %cst_25 {dimension_numbers = #tpu.dot_dimension_numbers<[1], [0], [0], [1], [0, 0, 1, 1], [], []>} : vector<16x64xf32>, vector<64x64xf32>, vector<16x64xf32> -> vector<16x64xf32>
    %22 = arith.addf %17, %21 : vector<16x64xf32>
    %23 = vector.broadcast %8 : vector<1x64xf32> to vector<16x64xf32>
    %24 = arith.addf %22, %23 : vector<16x64xf32>
    %cst_26 = arith.constant 0.000000e+00 : f32
    %25 = vector.broadcast %cst_26 : f32 to vector<16x64xf32>
    %26 = arith.maximumf %24, %25 : vector<16x64xf32>
    %c1_27 = arith.constant 1 : index
    %c0_28 = arith.constant 0 : index
    %27 = vector.load %arg10[%c1_27, %c0_28] : memref<18x64xf32, #tpu.memory_space<vmem>>, vector<16x64xf32>
    tpu.vector_store %arg10[%c1_27, %c0_28], %26 {strides = array<i32>} : memref<18x64xf32, #tpu.memory_space<vmem>>, vector<16x64xf32>,
    %c0_29 = arith.constant 0 : index
    %c0_30 = arith.constant 0 : index
    %28 = vector.load %arg7[%c0_29, %c0_30] : memref<1x128xf32, #tpu.memory_space<vmem>>, vector<1x128xf32>
    %c0_31 = arith.constant 0 : index
    %c0_32 = arith.constant 0 : index
    %29 = vector.load %arg10[%c0_31, %c0_32] : memref<18x64xf32, #tpu.memory_space<vmem>>, vector<16x64xf32>
    %c0_33 = arith.constant 0 : index
    %c0_34 = arith.constant 0 : index
    %c0_35 = arith.constant 0 : index
    %30 = vector.load %arg6[%c0_33, %c0_34, %c0_35] : memref<3x64x128xf32, #tpu.memory_space<vmem>>, vector<1x64x128xf32>
    %31 = vector.shape_cast %30 : vector<1x64x128xf32> to vector<64x128xf32>
    %cst_36 = arith.constant dense<0.000000e+00> : vector<16x128xf32>
    %32 = tpu.matmul %29, %31, %cst_36 {dimension_numbers = #tpu.dot_dimension_numbers<[1], [0], [0], [1], [0, 0, 1, 1], [], []>} : vector<16x64xf32>, vector<64x128xf32>, vector<16x128xf32> -> vector<16x128xf32>
    %c1_37 = arith.constant 1 : index
    %c0_38 = arith.constant 0 : index
    %33 = vector.load %arg10[%c1_37, %c0_38] : memref<18x64xf32, #tpu.memory_space<vmem>>, vector<16x64xf32>
    %c1_39 = arith.constant 1 : index
    %c0_40 = arith.constant 0 : index
    %c0_41 = arith.constant 0 : index
    %34 = vector.load %arg6[%c1_39, %c0_40, %c0_41] : memref<3x64x128xf32, #tpu.memory_space<vmem>>, vector<1x64x128xf32>
    %35 = vector.shape_cast %34 : vector<1x64x128xf32> to vector<64x128xf32>
    %cst_42 = arith.constant dense<0.000000e+00> : vector<16x128xf32>
    %36 = tpu.matmul %33, %35, %cst_42 {dimension_numbers = #tpu.dot_dimension_numbers<[1], [0], [0], [1], [0, 0, 1, 1], [], []>} : vector<16x64xf32>, vector<64x128xf32>, vector<16x128xf32> -> vector<16x128xf32>
    %37 = arith.addf %32, %36 : vector<16x128xf32>
    %c2_43 = arith.constant 2 : index
    %c0_44 = arith.constant 0 : index
    %38 = vector.load %arg10[%c2_43, %c0_44] : memref<18x64xf32, #tpu.memory_space<vmem>>, vector<16x64xf32>
    %c2_45 = arith.constant 2 : index
    %c0_46 = arith.constant 0 : index
    %c0_47 = arith.constant 0 : index
    %39 = vector.load %arg6[%c2_45, %c0_46, %c0_47] : memref<3x64x128xf32, #tpu.memory_space<vmem>>, vector<1x64x128xf32>
    %40 = vector.shape_cast %39 : vector<1x64x128xf32> to vector<64x128xf32>
    %cst_48 = arith.constant dense<0.000000e+00> : vector<16x128xf32>
    %41 = tpu.matmul %38, %40, %cst_48 {dimension_numbers = #tpu.dot_dimension_numbers<[1], [0], [0], [1], [0, 0, 1, 1], [], []>} : vector<16x64xf32>, vector<64x128xf32>, vector<16x128xf32> -> vector<16x128xf32>
    %42 = arith.addf %37, %41 : vector<16x128xf32>
    %43 = vector.broadcast %28 : vector<1x128xf32> to vector<16x128xf32>
    %44 = arith.addf %42, %43 : vector<16x128xf32>
    %c0_49 = arith.constant 0 : index
    %c0_50 = arith.constant 0 : index
    %45 = vector.load %arg11[%c0_49, %c0_50] : memref<16x128xf32, #tpu.memory_space<vmem>>, vector<16x128xf32>
    tpu.vector_store %arg11[%c0_49, %c0_50], %44 {strides = array<i32>} : memref<16x128xf32, #tpu.memory_space<vmem>>, vector<16x128xf32>,
    %c0_51 = arith.constant 0 : index
    %c0_52 = arith.constant 0 : index
    %46 = tpu.strided_load %arg11[%c0_51, %c0_52] {strides = array<i32: 2, 1>} : memref<16x128xf32, #tpu.memory_space<vmem>>, vector<8x128xf32>
    %c1_53 = arith.constant 1 : index
    %c0_54 = arith.constant 0 : index
    %47 = tpu.strided_load %arg11[%c1_53, %c0_54] {strides = array<i32: 2, 1>} : memref<16x128xf32, #tpu.memory_space<vmem>>, vector<8x128xf32>
    %48 = tpu.iota {dimensions = array<i32: 0>} : vector<8x128xi32>
    %c0_i32 = arith.constant 0 : i32
    %49 = vector.broadcast %c0_i32 : i32 to vector<8x128xi32>
    %50 = arith.cmpi eq, %48, %49 : vector<8x128xi32>
    %c1_i32 = arith.constant 1 : i32
    %51 = tpu.dynamic_rotate %47 by %c1_i32 dim 0 : vector<8x128xf32>, i32 -> vector<8x128xf32>
    %cst_55 = arith.constant -1.000000e+30 : f32
    %52 = vector.broadcast %cst_55 : f32 to vector<8x128xf32>
    %53 = arith.select %50, %52, %51 : vector<8x128xi1>, vector<8x128xf32>
    %54 = arith.maximumf %53, %46 : vector<8x128xf32>
    %55 = arith.maximumf %54, %47 : vector<8x128xf32>
    %56 = tpu.iota {dimensions = array<i32: 1>} : vector<8x128xi32>
    %c8_i32 = arith.constant 8 : i32
    %57 = vector.broadcast %c8_i32 : i32 to vector<8x128xi32>
    %58 = arith.cmpi slt, %56, %57 : vector<8x128xi32>
    %c8_i32_56 = arith.constant 8 : i32
    %59 = tpu.dynamic_rotate %55 by %c8_i32_56 dim 1 : vector<8x128xf32>, i32 -> vector<8x128xf32>
    %cst_57 = arith.constant -1.000000e+30 : f32
    %60 = vector.broadcast %cst_57 : f32 to vector<8x128xf32>
    %61 = arith.select %58, %60, %59 : vector<8x128xi1>, vector<8x128xf32>
    %c120_i32 = arith.constant 120 : i32
    %62 = vector.broadcast %c120_i32 : i32 to vector<8x128xi32>
    %63 = arith.cmpi sge, %56, %62 : vector<8x128xi32>
    %c120_i32_58 = arith.constant 120 : i32
    %64 = tpu.dynamic_rotate %55 by %c120_i32_58 dim 1 : vector<8x128xf32>, i32 -> vector<8x128xf32>
    %cst_59 = arith.constant -1.000000e+30 : f32
    %65 = vector.broadcast %cst_59 : f32 to vector<8x128xf32>
    %66 = arith.select %63, %65, %64 : vector<8x128xi1>, vector<8x128xf32>
    %67 = arith.maximumf %61, %55 : vector<8x128xf32>
    %68 = arith.maximumf %67, %66 : vector<8x128xf32>
    %c0_60 = arith.constant 0 : index
    %c0_61 = arith.constant 0 : index
    %69 = vector.load %arg8[%c0_60, %c0_61] : memref<128x64xf32, #tpu.memory_space<vmem>>, vector<128x64xf32>
    %cst_62 = arith.constant dense<0.000000e+00> : vector<8x64xf32>
    %70 = tpu.matmul %68, %69, %cst_62 {dimension_numbers = #tpu.dot_dimension_numbers<[1], [0], [0], [1], [0, 0, 1, 1], [], []>} : vector<8x128xf32>, vector<128x64xf32>, vector<8x64xf32> -> vector<8x64xf32>
    %c0_63 = arith.constant 0 : index
    %c0_64 = arith.constant 0 : index
    %c0_65 = arith.constant 0 : index
    %71 = tpu.strided_load %arg1[%c0_63, %c0_64, %c0_65] {strides = array<i32: 1, 2, 1>} : memref<1x16x64xf32, #tpu.memory_space<vmem>>, vector<1x8x64xf32>
    %72 = vector.shape_cast %71 : vector<1x8x64xf32> to vector<8x64xf32>
    %c0_66 = arith.constant 0 : index
    %c0_67 = arith.constant 0 : index
    %73 = vector.load %arg2[%c0_66, %c0_67] : memref<64x64xf32, #tpu.memory_space<vmem>>, vector<64x64xf32>
    %cst_68 = arith.constant dense<0.000000e+00> : vector<8x64xf32>
    %74 = tpu.matmul %72, %73, %cst_68 {dimension_numbers = #tpu.dot_dimension_numbers<[1], [0], [0], [1], [0, 0, 1, 1], [], []>} : vector<8x64xf32>, vector<64x64xf32>, vector<8x64xf32> -> vector<8x64xf32>
    %c0_69 = arith.constant 0 : index
    %c0_70 = arith.constant 0 : index
    %75 = vector.load %arg3[%c0_69, %c0_70] : memref<1x64xf32, #tpu.memory_space<vmem>>, vector<1x64xf32>
    %76 = vector.broadcast %75 : vector<1x64xf32> to vector<8x64xf32>
    %77 = arith.addf %74, %76 : vector<8x64xf32>
    %78 = arith.addf %77, %70 : vector<8x64xf32>
    %c0_71 = arith.constant 0 : index
    %c0_72 = arith.constant 0 : index
    %c0_73 = arith.constant 0 : index
    %79 = vector.load %arg9[%c0_71, %c0_72, %c0_73] : memref<1x8x64xf32, #tpu.memory_space<vmem>>, vector<1x8x64xf32>
    %80 = vector.shape_cast %79 : vector<1x8x64xf32> to vector<8x64xf32>
    %81 = vector.shape_cast %78 : vector<8x64xf32> to vector<1x8x64xf32>
    tpu.vector_store %arg9[%c0_71, %c0_72, %c0_73], %81 {strides = array<i32>} : memref<1x8x64xf32, #tpu.memory_space<vmem>>, vector<1x8x64xf32>,
    return
  }
  func.func @transform_0(%arg0: i32) -> (i32, i32, i32) {
    %c0_i32 = arith.constant 0 : i32
    %c0_i32_0 = arith.constant 0 : i32
    %c0_i32_1 = arith.constant 0 : i32
    return %arg0, %c0_i32, %c0_i32_0 : i32, i32, i32
  }
  func.func @transform_1(%arg0: i32) -> (i32, i32) {
    %c0_i32 = arith.constant 0 : i32
    %c0_i32_0 = arith.constant 0 : i32
    %c0_i32_1 = arith.constant 0 : i32
    return %c0_i32, %c0_i32_0 : i32, i32
  }
  func.func @transform_2(%arg0: i32) -> (i32, i32) {
    %c0_i32 = arith.constant 0 : i32
    %c0_i32_0 = arith.constant 0 : i32
    %c0_i32_1 = arith.constant 0 : i32
    return %c0_i32, %c0_i32_0 : i32, i32
  }
  func.func @transform_3(%arg0: i32) -> (i32, i32, i32) {
    %c0_i32 = arith.constant 0 : i32
    %c0_i32_0 = arith.constant 0 : i32
    %c0_i32_1 = arith.constant 0 : i32
    %c0_i32_2 = arith.constant 0 : i32
    return %c0_i32, %c0_i32_0, %c0_i32_1 : i32, i32, i32
  }
  func.func @transform_4(%arg0: i32) -> (i32, i32) {
    %c0_i32 = arith.constant 0 : i32
    %c0_i32_0 = arith.constant 0 : i32
    %c0_i32_1 = arith.constant 0 : i32
    return %c0_i32, %c0_i32_0 : i32, i32
  }
  func.func @transform_5(%arg0: i32) -> (i32, i32, i32) {
    %c0_i32 = arith.constant 0 : i32
    %c0_i32_0 = arith.constant 0 : i32
    %c0_i32_1 = arith.constant 0 : i32
    %c0_i32_2 = arith.constant 0 : i32
    return %c0_i32, %c0_i32_0, %c0_i32_1 : i32, i32, i32
  }
  func.func @transform_6(%arg0: i32) -> (i32, i32) {
    %c0_i32 = arith.constant 0 : i32
    %c0_i32_0 = arith.constant 0 : i32
    %c0_i32_1 = arith.constant 0 : i32
    return %c0_i32, %c0_i32_0 : i32, i32
  }
  func.func @transform_7(%arg0: i32) -> (i32, i32) {
    %c0_i32 = arith.constant 0 : i32
    %c0_i32_0 = arith.constant 0 : i32
    %c0_i32_1 = arith.constant 0 : i32
    return %c0_i32, %c0_i32_0 : i32, i32
  }
  func.func @transform_8(%arg0: i32) -> (i32, i32, i32) {
    %c0_i32 = arith.constant 0 : i32
    %c0_i32_0 = arith.constant 0 : i32
    %c0_i32_1 = arith.constant 0 : i32
    return %arg0, %c0_i32, %c0_i32_0 : i32, i32, i32
  }
}

</mosaic_0001>

<llo_original>
// kernel: tpu_custom_call.1
$region0: #{tpu_custom_call.1}
  #allocation0 [shape = 'u32[]', space=smem, size = 0x4, offset = 0x4, fixed_abs, tag = 'smem constant byte address 0x4 - core index']
  #allocation1 [shape = 'u32[144,128]{1,0:T(1,128)}', space=vmem, size = 0x12000, scoped, tag = 'internal scratch']
  #allocation2 [shape = 'f32[18,64]{1,0:T(8,128)}', space=vmem, size = 0x3000, scoped, tag = 'scratch operand']
  #allocation3 [shape = 'f32[16,128]{1,0:T(8,128)}', space=vmem, size = 0x2000, scoped, tag = 'scratch operand']
  %s0 = inlined_call_operand.hbm [shape: f32[2,16,64], index: 0, kind: input, shape index: {}]
  %s1 = inlined_call_operand.hbm [shape: f32[64,64], index: 1, kind: input, shape index: {}]
  %s2 = inlined_call_operand.vmem [shape: f32[1,64], index: 2, kind: input, shape index: {}]
  %s3 = inlined_call_operand.vmem [shape: f32[3,64,64], index: 3, kind: input, shape index: {}]
  %s4 = inlined_call_operand.vmem [shape: f32[1,64], index: 4, kind: input, shape index: {}]
  %s5 = inlined_call_operand.hbm [shape: f32[3,64,128], index: 5, kind: input, shape index: {}]
  %s6 = inlined_call_operand.vmem [shape: f32[1,128], index: 6, kind: input, shape index: {}]
  %s7 = inlined_call_operand.vmem [shape: f32[128,64], index: 7, kind: input, shape index: {}]
  %s8 = inlined_call_operand.hbm [shape: f32[2,8,64], index: 8, kind: output, shape index: {}]
  %s9 = sld [smem:[#allocation0]]
  $region77: #{tpu_custom_call.1} parent=0
    _
  %s11 = ssub.s32 1, %s9
  %s12 = scalar_select 0, %s11, %s9
  $region1: #{tpu_custom_call.1} parent=0
    #allocation4 [shape = 'u8[16384]{0}', space=vmem, size = 0x4000, scoped, tag = 'input window, operand 0']
    #allocation5 [shape = 's32[2]{0}', space=sflag, size = 0x8, scoped, tag = 'scoped memory for tpu_custom_call.1']
    #allocation6 [shape = 's32[2]{0}', space=sflag, size = 0x8, scoped, tag = 'scoped memory for tpu_custom_call.1']
    #allocation7 [shape = 'u8[32768]{0}', space=vmem, size = 0x8000, scoped, tag = 'input window, operand 1, single buffered']
    #allocation8 [shape = 's32[1]{0}', space=sflag, size = 0x4, scoped, tag = 'scoped memory for tpu_custom_call.1']
    #allocation9 [shape = 'u8[98304]{0}', space=vmem, size = 0x18000, scoped, tag = 'input window, operand 5, single buffered']
    #allocation10 [shape = 'u8[8192]{0}', space=vmem, size = 0x2000, scoped, tag = 'output window, operand 0']
    %13 = vsyncpa [#allocation5], 0
    %s14 = scalar_lea.sflag [#allocation5], 1
    %15 = vsyncpa %s14, 0
    %16 = vsyncpa [#allocation8], 0
    %17 = vsyncpa [#allocation6], 0
    %s18 = scalar_lea.sflag [#allocation6], 1
    %19 = vsyncpa %s18, 0
    loop: start=0, step=1, limit=4
    $region2: #{tpu_custom_call.1} parent=1 // loop_pre_header
      _
    $region3: #{tpu_custom_call.1} parent=1 // loop_header
      %s21 = sphi 0, %s25
      %p22 = scmp.ge.s32.totalorder %s21, 4
      %s31 = sphi 0, %s33
      %s34 = sphi 0, %s31
      %s35 = sphi 0, %s34
      %s51 = sphi 0, %s35
      %s55 = sphi 0, %s55
      %s57 = sphi 0, %s55
      %s58 = sphi 0, %s57
      %s72 = sphi 0, %s58
      %s76 = sphi 0, %s76
      %s78 = sphi 0, %s76
      %s79 = sphi 0, %s78
      %s93 = sphi 0, %s79
      %s97 = sphi 0, %s97
      %s99 = sphi 0, %s97
      %s100 = sphi 0, %s99
      %s114 = sphi 0, %s100
      %s118 = sphi 0, %s118
      %s120 = sphi 0, %s118
      %s121 = sphi 0, %s120
      %s135 = sphi 0, %s121
      %s139 = sphi 0, %s139
      %s141 = sphi 0, %s139
      %s142 = sphi 0, %s141
      %s156 = sphi 0, %s142
      %s160 = sphi 0, %s160
      %s162 = sphi 0, %s160
      %s163 = sphi 0, %s162
      %s177 = sphi 0, %s163
      %s181 = sphi 0, %s181
      %s183 = sphi 0, %s181
      %s184 = sphi 0, %s183
      %s198 = sphi 0, %s184
      %s204 = sphi 0, %s206
      %s207 = sphi 0, %s204
      %s208 = sphi 0, %s207
      %s224 = sphi 0, %s208
    $region4: #{tpu_custom_call.1} parent=1 // loop_header_branch
      %24 = sbr.rel (%p22) target = $region8
    $region5: #{tpu_custom_call.1} parent=1 // loop_body
      %s26 = ssub.s32 %s21, 1
      %s27 = ssub.s32 %s21, 2
      %s28 = sadd.s32 %s21, 1
      %s29 = ssub.s32 %s21, %s28
      %p30 = scmp.eq.s32.totalorder %s29, 0
      %s32 = sadd.s32 %s31, 1
      %s33 = scalar_select %p30, %s31, %s32
      %p36 = pneg %p30
      %p37 = scmp.eq.s32.totalorder %s21, 1
      %p38 = por %p36, %p37
      %p39 = scmp.ne.s32.totalorder %s31, %s34
      %p40 = scmp.eq.s32.totalorder %s21, 0
      %p41 = por %p39, %p40
      %p42 = scmp.ne.s32.totalorder %s31, %s34
      %p43 = scmp.eq.s32.totalorder %s26, 1
      %p44 = por %p42, %p43
      %p45 = scmp.ne.s32.totalorder %s34, %s35
      %p46 = scmp.eq.s32.totalorder %s26, 0
      %p47 = por %p45, %p46
      %p48 = scmp.ne.s32.totalorder %s34, %s35
      %p49 = scmp.eq.s32.totalorder %s27, 1
      %p50 = por %p48, %p49
      %p52 = scmp.ne.s32.totalorder %s35, %s51
      %p53 = scmp.eq.s32.totalorder %s27, 0
      %p54 = por %p52, %p53
      %s56 = sadd.s32 %s55, 1
      %p59 = scmp.eq.s32.totalorder %s21, 1
      %p60 = scmp.ne.s32.totalorder %s55, %s57
      %p61 = scmp.eq.s32.totalorder %s21, 0
      %p62 = por %p60, %p61
      %p63 = scmp.ne.s32.totalorder %s55, %s57
      %p64 = scmp.eq.s32.totalorder %s26, 1
      %p65 = por %p63, %p64
      %p66 = scmp.ne.s32.totalorder %s57, %s58
      %p67 = scmp.eq.s32.totalorder %s26, 0
      %p68 = por %p66, %p67
      %p69 = scmp.ne.s32.totalorder %s57, %s58
      %p70 = scmp.eq.s32.totalorder %s27, 1
      %p71 = por %p69, %p70
      %p73 = scmp.ne.s32.totalorder %s58, %s72
      %p74 = scmp.eq.s32.totalorder %s27, 0
      %p75 = por %p73, %p74
      %s77 = sadd.s32 %s76, 1
      %p80 = scmp.eq.s32.totalorder %s21, 1
      %p81 = scmp.ne.s32.totalorder %s76, %s78
      %p82 = scmp.eq.s32.totalorder %s21, 0
      %p83 = por %p81, %p82
      %p84 = scmp.ne.s32.totalorder %s76, %s78
      %p85 = scmp.eq.s32.totalorder %s26, 1
      %p86 = por %p84, %p85
      %p87 = scmp.ne.s32.totalorder %s78, %s79
      %p88 = scmp.eq.s32.totalorder %s26, 0
      %p89 = por %p87, %p88
      %p90 = scmp.ne.s32.totalorder %s78, %s79
      %p91 = scmp.eq.s32.totalorder %s27, 1
      %p92 = por %p90, %p91
      %p94 = scmp.ne.s32.totalorder %s79, %s93
      %p95 = scmp.eq.s32.totalorder %s27, 0
      %p96 = por %p94, %p95
      %s98 = sadd.s32 %s97, 1
      %p101 = scmp.eq.s32.totalorder %s21, 1
      %p102 = scmp.ne.s32.totalorder %s97, %s99
      %p103 = scmp.eq.s32.totalorder %s21, 0
      %p104 = por %p102, %p103
      %p105 = scmp.ne.s32.totalorder %s97, %s99
      %p106 = scmp.eq.s32.totalorder %s26, 1
      %p107 = por %p105, %p106
      %p108 = scmp.ne.s32.totalorder %s99, %s100
      %p109 = scmp.eq.s32.totalorder %s26, 0
      %p110 = por %p108, %p109
      %p111 = scmp.ne.s32.totalorder %s99, %s100
      %p112 = scmp.eq.s32.totalorder %s27, 1
      %p113 = por %p111, %p112
      %p115 = scmp.ne.s32.totalorder %s100, %s114
      %p116 = scmp.eq.s32.totalorder %s27, 0
      %p117 = por %p115, %p116
      %s119 = sadd.s32 %s118, 1
      %p122 = scmp.eq.s32.totalorder %s21, 1
      %p123 = scmp.ne.s32.totalorder %s118, %s120
      %p124 = scmp.eq.s32.totalorder %s21, 0
      %p125 = por %p123, %p124
      %p126 = scmp.ne.s32.totalorder %s118, %s120
      %p127 = scmp.eq.s32.totalorder %s26, 1
      %p128 = por %p126, %p127
      %p129 = scmp.ne.s32.totalorder %s120, %s121
      %p130 = scmp.eq.s32.totalorder %s26, 0
      %p131 = por %p129, %p130
      %p132 = scmp.ne.s32.totalorder %s120, %s121
      %p133 = scmp.eq.s32.totalorder %s27, 1
      %p134 = por %p132, %p133
      %p136 = scmp.ne.s32.totalorder %s121, %s135
      %p137 = scmp.eq.s32.totalorder %s27, 0
      %p138 = por %p136, %p137
      %s140 = sadd.s32 %s139, 1
      %p143 = scmp.eq.s32.totalorder %s21, 1
      %p144 = scmp.ne.s32.totalorder %s139, %s141
      %p145 = scmp.eq.s32.totalorder %s21, 0
      %p146 = por %p144, %p145
      %p147 = scmp.ne.s32.totalorder %s139, %s141
      %p148 = scmp.eq.s32.totalorder %s26, 1
      %p149 = por %p147, %p148
      %p150 = scmp.ne.s32.totalorder %s141, %s142
      %p151 = scmp.eq.s32.totalorder %s26, 0
      %p152 = por %p150, %p151
      %p153 = scmp.ne.s32.totalorder %s141, %s142
      %p154 = scmp.eq.s32.totalorder %s27, 1
      %p155 = por %p153, %p154
      %p157 = scmp.ne.s32.totalorder %s142, %s156
      %p158 = scmp.eq.s32.totalorder %s27, 0
      %p159 = por %p157, %p158
      %s161 = sadd.s32 %s160, 1
      %p164 = scmp.eq.s32.totalorder %s21, 1
      %p165 = scmp.ne.s32.totalorder %s160, %s162
      %p166 = scmp.eq.s32.totalorder %s21, 0
      %p167 = por %p165, %p166
      %p168 = scmp.ne.s32.totalorder %s160, %s162
      %p169 = scmp.eq.s32.totalorder %s26, 1
      %p170 = por %p168, %p169
      %p171 = scmp.ne.s32.totalorder %s162, %s163
      %p172 = scmp.eq.s32.totalorder %s26, 0
      %p173 = por %p171, %p172
      %p174 = scmp.ne.s32.totalorder %s162, %s163
      %p175 = scmp.eq.s32.totalorder %s27, 1
      %p176 = por %p174, %p175
      %p178 = scmp.ne.s32.totalorder %s163, %s177
      %p179 = scmp.eq.s32.totalorder %s27, 0
      %p180 = por %p178, %p179
      %s182 = sadd.s32 %s181, 1
      %p185 = scmp.eq.s32.totalorder %s21, 1
      %p186 = scmp.ne.s32.totalorder %s181, %s183
      %p187 = scmp.eq.s32.totalorder %s21, 0
      %p188 = por %p186, %p187
      %p189 = scmp.ne.s32.totalorder %s181, %s183
      %p190 = scmp.eq.s32.totalorder %s26, 1
      %p191 = por %p189, %p190
      %p192 = scmp.ne.s32.totalorder %s183, %s184
      %p193 = scmp.eq.s32.totalorder %s26, 0
      %p194 = por %p192, %p193
      %p195 = scmp.ne.s32.totalorder %s183, %s184
      %p196 = scmp.eq.s32.totalorder %s27, 1
      %p197 = por %p195, %p196
      %p199 = scmp.ne.s32.totalorder %s184, %s198
      %p200 = scmp.eq.s32.totalorder %s27, 0
      %p201 = por %p199, %p200
      %s202 = ssub.s32 %s21, %s28
      %p203 = scmp.eq.s32.totalorder %s202, 0
      %s205 = sadd.s32 %s204, 1
      %s206 = scalar_select %p203, %s204, %s205
      %p209 = pneg %p203
      %p210 = scmp.eq.s32.totalorder %s21, 1
      %p211 = por %p209, %p210
      %p212 = scmp.ne.s32.totalorder %s204, %s207
      %p213 = scmp.eq.s32.totalorder %s21, 0
      %p214 = por %p212, %p213
      %p215 = scmp.ne.s32.totalorder %s204, %s207
      %p216 = scmp.eq.s32.totalorder %s26, 1
      %p217 = por %p215, %p216
      %p218 = scmp.ne.s32.totalorder %s207, %s208
      %p219 = scmp.eq.s32.totalorder %s26, 0
      %p220 = por %p218, %p219
      %p221 = scmp.ne.s32.totalorder %s207, %s208
      %p222 = scmp.eq.s32.totalorder %s27, 1
      %p223 = por %p221, %p222
      %p225 = scmp.ne.s32.totalorder %s208, %s224
      %p226 = scmp.eq.s32.totalorder %s27, 0
      %p227 = por %p225, %p226
      %p228 = scmp.le.s32.totalorder 1, %s21
      %p229 = scmp.lt.s32.totalorder %s21, 3
      %p230 = pnand %p228, %p229
      %p231 = pneg %p230
      // Predicated region
      $region9: #{tpu_custom_call.1} parent=5 // pred_check
        _
      $region10: #{tpu_custom_call.1} parent=5 // pred_check_branch
        %233 = sbr.rel (%p230) target = $region12
      $region11: #{tpu_custom_call.1} parent=5 // pred_region
        %s234 = ssub.s32 %s21, 1
        // Predicated region
        $region13: #{tpu_custom_call.1} parent=11 // pred_check
          %p235 = pneg %p68
        $region14: #{tpu_custom_call.1} parent=11 // pred_check_branch
          %237 = sbr.rel (%p235) target = $region16
        $region15: #{tpu_custom_call.1} parent=11 // pred_region
          %s239 = ssub.s32 1024, 1024
          %240 = vsyncadd [#allocation8], %s239
          %s241 = sshll.u32 [#allocation7], 4
          %s242 = int_to_ptr.vmem [resolvable:$true] %s241
          %247 = dma.hbm_to_vmem [thread:$0]  %s1, 1024, %s242, [#allocation8], 128, 128, 8
        $region16: #{tpu_custom_call.1} parent=11 // pred_fallthru
          _
        // Predicated region
        $region17: #{tpu_custom_call.1} parent=11 // pred_check
          %p248 = pneg %p89
        $region18: #{tpu_custom_call.1} parent=11 // pred_check_branch
          %250 = sbr.rel (%p248) target = $region20
        $region19: #{tpu_custom_call.1} parent=11 // pred_region
          _
        $region20: #{tpu_custom_call.1} parent=11 // pred_fallthru
          _
        // Predicated region
        $region21: #{tpu_custom_call.1} parent=11 // pred_check
          %p251 = pneg %p110
        $region22: #{tpu_custom_call.1} parent=11 // pred_check_branch
          %253 = sbr.rel (%p251) target = $region24
        $region23: #{tpu_custom_call.1} parent=11 // pred_region
          _
        $region24: #{tpu_custom_call.1} parent=11 // pred_fallthru
          _
        // Predicated region
        $region25: #{tpu_custom_call.1} parent=11 // pred_check
          %p254 = pneg %p131
        $region26: #{tpu_custom_call.1} parent=11 // pred_check_branch
          %256 = sbr.rel (%p254) target = $region28
        $region27: #{tpu_custom_call.1} parent=11 // pred_region
          _
        $region28: #{tpu_custom_call.1} parent=11 // pred_fallthru
          _
        // Predicated region
        $region29: #{tpu_custom_call.1} parent=11 // pred_check
          %p257 = pneg %p152
        $region30: #{tpu_custom_call.1} parent=11 // pred_check_branch
          %259 = sbr.rel (%p257) target = $region32
        $region31: #{tpu_custom_call.1} parent=11 // pred_region
          %s261 = ssub.s32 3072, 3072
          %262 = vsyncadd [#allocation8], %s261
          %s263 = sshll.u32 [#allocation9], 4
          %s264 = int_to_ptr.vmem [resolvable:$true] %s263
          %269 = dma.hbm_to_vmem [thread:$0]  %s5, 3072, %s264, [#allocation8], 128, 128, 8
        $region32: #{tpu_custom_call.1} parent=11 // pred_fallthru
          _
        // Predicated region
        $region33: #{tpu_custom_call.1} parent=11 // pred_check
          %p270 = pneg %p173
        $region34: #{tpu_custom_call.1} parent=11 // pred_check_branch
          %272 = sbr.rel (%p270) target = $region36
        $region35: #{tpu_custom_call.1} parent=11 // pred_region
          _
        $region36: #{tpu_custom_call.1} parent=11 // pred_fallthru
          _
        // Predicated region
        $region37: #{tpu_custom_call.1} parent=11 // pred_check
          %p273 = pneg %p194
        $region38: #{tpu_custom_call.1} parent=11 // pred_check_branch
          %275 = sbr.rel (%p273) target = $region40
        $region39: #{tpu_custom_call.1} parent=11 // pred_region
          _
        $region40: #{tpu_custom_call.1} parent=11 // pred_fallthru
          _
      $region12: #{tpu_custom_call.1} parent=5 // pred_fallthru
        _
      %p276 = scmp.lt.s32.totalorder %s21, 2
      // Predicated region
      $region41: #{tpu_custom_call.1} parent=5 // pred_check
        %p277 = pneg %p276
      $region42: #{tpu_custom_call.1} parent=5 // pred_check_branch
        %279 = sbr.rel (%p277) target = $region44
      $region43: #{tpu_custom_call.1} parent=5 // pred_region
        // Predicated region
        $region45: #{tpu_custom_call.1} parent=43 // pred_check
          %p280 = pneg %p41
        $region46: #{tpu_custom_call.1} parent=43 // pred_check_branch
          %282 = sbr.rel (%p280) target = $region48
        $region47: #{tpu_custom_call.1} parent=43 // pred_region
          %s283 = sand.u32 %s31, 1
          %s284 = scalar_lea.sflag [#allocation5], %s283
          %s285 = sand.u32 %s31, 1
          %s286 = smul.addr %s285, 16
          %s287 = scalar_lea.vmem [#allocation4], %s286
          %s289 = ssub.s32 256, 256
          %290 = vsyncadd %s284, %s289
          %s291 = smul.addr %s21, 2
          %s292 = smul.addr %s291, 128
          %s293 = scalar_lea.hbm %s0, %s292
          %s294 = sshll.u32 %s287, 4
          %s295 = int_to_ptr.vmem [resolvable:$true] %s294
          %300 = dma.hbm_to_vmem [thread:$0]  %s293, 256, %s295, %s284, 128, 128, 8
        $region48: #{tpu_custom_call.1} parent=43 // pred_fallthru
          _
      $region44: #{tpu_custom_call.1} parent=5 // pred_fallthru
        _
      %p301 = scmp.le.s32.totalorder 1, %s21
      %p302 = scmp.lt.s32.totalorder %s21, 3
      %p303 = pnand %p301, %p302
      %p304 = pneg %p303
      // Predicated region
      $region49: #{tpu_custom_call.1} parent=5 // pred_check
        _
      $region50: #{tpu_custom_call.1} parent=5 // pred_check_branch
        %306 = sbr.rel (%p303) target = $region52
      $region51: #{tpu_custom_call.1} parent=5 // pred_region
        %s307 = ssub.s32 %s21, 1
        %s308 = sand.u32 %s34, 1
        %s309 = scalar_lea.sflag [#allocation5], %s308
        %s310 = sand.u32 %s34, 1
        %s311 = smul.addr %s310, 16
        %s312 = scalar_lea.vmem [#allocation4], %s311
        // Predicated region
        $region53: #{tpu_custom_call.1} parent=51 // pred_check
          %p313 = pneg %p47
        $region54: #{tpu_custom_call.1} parent=51 // pred_check_branch
          %315 = sbr.rel (%p313) target = $region56
        $region55: #{tpu_custom_call.1} parent=51 // pred_region
          %316 = dma.done %s309, 256
        $region56: #{tpu_custom_call.1} parent=51 // pred_fallthru
          _
        // Predicated region
        $region57: #{tpu_custom_call.1} parent=51 // pred_check
          %p317 = pneg %p68
        $region58: #{tpu_custom_call.1} parent=51 // pred_check_branch
          %319 = sbr.rel (%p317) target = $region60
        $region59: #{tpu_custom_call.1} parent=51 // pred_region
          %320 = dma.done [#allocation8], 1024
        $region60: #{tpu_custom_call.1} parent=51 // pred_fallthru
          _
        // Predicated region
        $region61: #{tpu_custom_call.1} parent=51 // pred_check
          %p321 = pneg %p152
        $region62: #{tpu_custom_call.1} parent=51 // pred_check_branch
          %323 = sbr.rel (%p321) target = $region64
        $region63: #{tpu_custom_call.1} parent=51 // pred_region
          %324 = dma.done [#allocation8], 3072
        $region64: #{tpu_custom_call.1} parent=51 // pred_fallthru
          _
        %s325 = sand.u32 %s34, 1
        %s326 = scalar_lea.sflag [#allocation5], %s325
        %s327 = sand.u32 %s34, 1
        %s328 = smul.addr %s327, 16
        %s329 = scalar_lea.vmem [#allocation4], %s328
        %p330 = pneg %p47
        %p331 = pneg %p44
        %p332 = pneg %p68
        %p333 = pneg %p65
        %p334 = pneg %p89
        %p335 = pneg %p86
        %p336 = pneg %p110
        %p337 = pneg %p107
        %p338 = pneg %p131
        %p339 = pneg %p128
        %p340 = pneg %p152
        %p341 = pneg %p149
        %p342 = pneg %p173
        %p343 = pneg %p170
        %p344 = pneg %p194
        %p345 = pneg %p191
        %p346 = pneg %p220
        %p347 = pneg %p217
        %s348 = sand.u32 %s207, 1
        %s349 = scalar_lea.sflag [#allocation6], %s348
        %s350 = sand.u32 %s207, 1
        %s351 = smul.addr %s350, 8
        %s352 = scalar_lea.vmem [#allocation10], %s351
        %vm353 = vcmask 516096
        %354 = vst.msk [vmem:[#allocation2] sm:$0x1] %vm353, 0.0
        %355 = vst.msk [vmem:[#allocation2 + $0x11] sm:$0x1] %vm353, 0.0
        %v356 = vld [vmem:[%s312] sm:$0xff]
        %v357 = vld [vmem:[%s312 + $0x8] sm:$0xff]
        %v358 = vmax.f32 %v356, 0.0
        %v359 = vmax.f32 %v357, 0.0
        %vm360 = vcmask 523264
        %361 = vst.msk [vmem:[#allocation2 + $0x1] sm:$0xff] %vm360, %v358
        %362 = vst.msk [vmem:[#allocation2 + $0x9] sm:$0xff] %vm360, %v359
        %v363 = vld [vmem:[%s4] sm:$0x1]
        %v364 = vld [vmem:[#allocation2] sm:$0xff]
        %v365 = vld [vmem:[#allocation2 + $0x8] sm:$0xff]
        %v366 = vld [vmem:[%s3] sm:$0xff]
        %v367 = vld [vmem:[%s3 + $0x8] sm:$0xff]
        %v368 = vld [vmem:[%s3 + $0x10] sm:$0xff]
        %v369 = vld [vmem:[%s3 + $0x18] sm:$0xff]
        %v370 = vld [vmem:[%s3 + $0x20] sm:$0xff]
        %v371 = vld [vmem:[%s3 + $0x28] sm:$0xff]
        %v372 = vld [vmem:[%s3 + $0x30] sm:$0xff]
        %v373 = vld [vmem:[%s3 + $0x38] sm:$0xff]
        %v374 = vld [vmem:[#allocation2 + $0x1] sm:$0xff]
        %v375 = vld [vmem:[#allocation2 + $0x9] sm:$0xff]
        %s376 = scalar_lea.vmem %s3, 64
        %v377 = vld [vmem:[%s376] sm:$0xff]
        %v378 = vld [vmem:[%s376 + $0x8] sm:$0xff]
        %v379 = vld [vmem:[%s376 + $0x10] sm:$0xff]
        %v380 = vld [vmem:[%s376 + $0x18] sm:$0xff]
        %v381 = vld [vmem:[%s376 + $0x20] sm:$0xff]
        %v382 = vld [vmem:[%s376 + $0x28] sm:$0xff]
        %v383 = vld [vmem:[%s376 + $0x30] sm:$0xff]
        %v384 = vld [vmem:[%s376 + $0x38] sm:$0xff]
        %v386 = vsel %vm360, %v374, 0
        %v389 = vsel %vm360, %v375, 0
        %391 = vmatprep.subr.mxu0 0.0
        %392 = vmatpush1.msra.mxu0 %v377
        %393 = vmatprep.subr.mxu0 0.0
        %394 = vmatpush1.msra.mxu0 %v378
        %395 = vmatprep.subr.mxu0 0.0
        %396 = vmatpush1.msra.mxu0 %v379
        %397 = vmatprep.subr.mxu0 0.0
        %398 = vmatpush1.msra.mxu0 %v380
        %399 = vmatprep.subr.mxu0 0.0
        %400 = vmatpush1.msra.mxu0 %v381
        %401 = vmatprep.subr.mxu0 0.0
        %402 = vmatpush1.msra.mxu0 %v382
        %403 = vmatprep.subr.mxu0 0.0
        %404 = vmatpush1.msra.mxu0 %v383
        %405 = vmatprep.subr.mxu0 0.0
        %406 = vmatpush1.msra.mxu0 %v384
        %407 = vmatprep.subr.mxu0 0.0
        %408 = vmatpush1.msra.mxu0 0.0
        %409 = vmatprep.subr.mxu0 0.0
        %410 = vmatpush1.msra.mxu0 0.0
        %411 = vmatprep.subr.mxu0 0.0
        %412 = vmatpush1.msra.mxu0 0.0
        %413 = vmatprep.subr.mxu0 0.0
        %414 = vmatpush1.msra.mxu0 0.0
        %415 = vmatprep.subr.mxu0 0.0
        %416 = vmatpush1.msra.mxu0 0.0
        %417 = vmatprep.subr.mxu0 0.0
        %418 = vmatpush1.msra.mxu0 0.0
        %419 = vmatprep.subr.mxu0 0.0
        %420 = vmatpush1.msra.mxu0 0.0
        %421 = vmatprep.subr.mxu0 0.0
        %422 = vmatpush1.msra.mxu0 0.0
        %423 = vmatprep.subr.mxu0 0.0
        %424 = vmatpush1.msra.mxu0 0.0
        %425 = vmatprep.subr.mxu0 0.0
        %426 = vmatpush1.msra.mxu0 0.0
        %427 = vmatprep.subr.mxu0 0.0
        %428 = vmatpush1.msra.mxu0 0.0
        %429 = vmatprep.subr.mxu0 0.0
        %430 = vmatpush1.msra.mxu0 0.0
        %431 = vmatprep.subr.mxu0 0.0
        %432 = vmatpush1.msra.mxu0 0.0
        %433 = vmatprep.subr.mxu0 0.0
        %434 = vmatpush1.msra.mxu0 0.0
        %435 = vmatprep.subr.mxu0 0.0
        %436 = vmatpush1.msra.mxu0 0.0
        %437 = vmatprep.subr.mxu0 0.0
        %438 = vmatpush1.msra.mxu0 0.0
        %439 = vmatprep.subr.mxu0 0.0
        %440 = vmatpush1.msra.mxu0 0.0
        %441 = vmatprep.subr.mxu0 0.0
        %442 = vmatpush1.msra.mxu0 0.0
        %443 = vmatprep.subr.mxu0 0.0
        %444 = vmatpush1.msra.mxu0 0.0
        %445 = vmatprep.subr.mxu0 0.0
        %446 = vmatpush1.msra.mxu0 0.0
        %447 = vmatprep.subr.mxu0 0.0
        %448 = vmatpush1.msra.mxu0 0.0
        %449 = vmatprep.subr.mxu0 0.0
        %450 = vmatpush1.msra.mxu0 0.0
        %451 = vmatprep.subr.mxu0 0.0
        %452 = vmatpush1.msra.mxu0 0.0
        %453 = vmatprep.subr.mxu0 0.0
        %454 = vmatpush1.msra.mxu0 0.0
        %455 = vmatprep.mubr.f32.mxu0 0.0
        %456 = vmatmul.mubr.f32.gmra.mrb[0].mxu0 %v386
        %v457 = vpop.f32.mrb[0].mxu0
        %v458 = vadd.f32 0.0, %v457
        %v459 = vpop.f32.mrb[0].mxu0
        %460 = vmatprep.mubr.f32.mxu0 0.0
        %461 = vmatmul.mubr.f32.gmra.mrb[0].mxu0 %v389
        %v462 = vpop.f32.mrb[0].mxu0
        %v463 = vadd.f32 0.0, %v462
        %v464 = vpop.f32.mrb[0].mxu0
        %465 = vdwg.mxu0
        %v467 = vsel %vm360, %v364, 0
        %v470 = vsel %vm360, %v365, 0
        %472 = vmatprep.subr.mxu0 0.0
        %473 = vmatpush1.msra.mxu0 %v366
        %474 = vmatprep.subr.mxu0 0.0
        %475 = vmatpush1.msra.mxu0 %v367
        %476 = vmatprep.subr.mxu0 0.0
        %477 = vmatpush1.msra.mxu0 %v368
        %478 = vmatprep.subr.mxu0 0.0
        %479 = vmatpush1.msra.mxu0 %v369
        %480 = vmatprep.subr.mxu0 0.0
        %481 = vmatpush1.msra.mxu0 %v370
        %482 = vmatprep.subr.mxu0 0.0
        %483 = vmatpush1.msra.mxu0 %v371
        %484 = vmatprep.subr.mxu0 0.0
        %485 = vmatpush1.msra.mxu0 %v372
        %486 = vmatprep.subr.mxu0 0.0
        %487 = vmatpush1.msra.mxu0 %v373
        %488 = vmatprep.subr.mxu0 0.0
        %489 = vmatpush1.msra.mxu0 0.0
        %490 = vmatprep.subr.mxu0 0.0
        %491 = vmatpush1.msra.mxu0 0.0
        %492 = vmatprep.subr.mxu0 0.0
        %493 = vmatpush1.msra.mxu0 0.0
        %494 = vmatprep.subr.mxu0 0.0
        %495 = vmatpush1.msra.mxu0 0.0
        %496 = vmatprep.subr.mxu0 0.0
        %497 = vmatpush1.msra.mxu0 0.0
        %498 = vmatprep.subr.mxu0 0.0
        %499 = vmatpush1.msra.mxu0 0.0
        %500 = vmatprep.subr.mxu0 0.0
        %501 = vmatpush1.msra.mxu0 0.0
        %502 = vmatprep.subr.mxu0 0.0
        %503 = vmatpush1.msra.mxu0 0.0
        %504 = vmatprep.subr.mxu0 0.0
        %505 = vmatpush1.msra.mxu0 0.0
        %506 = vmatprep.subr.mxu0 0.0
        %507 = vmatpush1.msra.mxu0 0.0
        %508 = vmatprep.subr.mxu0 0.0
        %509 = vmatpush1.msra.mxu0 0.0
        %510 = vmatprep.subr.mxu0 0.0
        %511 = vmatpush1.msra.mxu0 0.0
        %512 = vmatprep.subr.mxu0 0.0
        %513 = vmatpush1.msra.mxu0 0.0
        %514 = vmatprep.subr.mxu0 0.0
        %515 = vmatpush1.msra.mxu0 0.0
        %516 = vmatprep.subr.mxu0 0.0
        %517 = vmatpush1.msra.mxu0 0.0
        %518 = vmatprep.subr.mxu0 0.0
        %519 = vmatpush1.msra.mxu0 0.0
        %520 = vmatprep.subr.mxu0 0.0
        %521 = vmatpush1.msra.mxu0 0.0
        %522 = vmatprep.subr.mxu0 0.0
        %523 = vmatpush1.msra.mxu0 0.0
        %524 = vmatprep.subr.mxu0 0.0
        %525 = vmatpush1.msra.mxu0 0.0
        %526 = vmatprep.subr.mxu0 0.0
        %527 = vmatpush1.msra.mxu0 0.0
        %528 = vmatprep.subr.mxu0 0.0
        %529 = vmatpush1.msra.mxu0 0.0
        %530 = vmatprep.subr.mxu0 0.0
        %531 = vmatpush1.msra.mxu0 0.0
        %532 = vmatprep.subr.mxu0 0.0
        %533 = vmatpush1.msra.mxu0 0.0
        %534 = vmatprep.subr.mxu0 0.0
        %535 = vmatpush1.msra.mxu0 0.0
        %536 = vmatprep.mubr.f32.mxu0 0.0
        %537 = vmatmul.mubr.f32.gmra.mrb[0].mxu0 %v467
        %v538 = vpop.f32.mrb[0].mxu0
        %v539 = vadd.f32 %v458, %v538
        %v540 = vpop.f32.mrb[0].mxu0
        %541 = vmatprep.mubr.f32.mxu0 0.0
        %542 = vmatmul.mubr.f32.gmra.mrb[0].mxu0 %v470
        %v543 = vpop.f32.mrb[0].mxu0
        %v544 = vadd.f32 %v463, %v543
        %v545 = vpop.f32.mrb[0].mxu0
        %546 = vdwg.mxu0
        %v547 = vld [vmem:[#allocation2 + $0x2] sm:$0xff]
        %v548 = vld [vmem:[#allocation2 + $0xa] sm:$0xff]
        %s549 = scalar_lea.vmem %s3, 128
        %v550 = vld [vmem:[%s549] sm:$0xff]
        %v551 = vld [vmem:[%s549 + $0x8] sm:$0xff]
        %v552 = vld [vmem:[%s549 + $0x10] sm:$0xff]
        %v553 = vld [vmem:[%s549 + $0x18] sm:$0xff]
        %v554 = vld [vmem:[%s549 + $0x20] sm:$0xff]
        %v555 = vld [vmem:[%s549 + $0x28] sm:$0xff]
        %v556 = vld [vmem:[%s549 + $0x30] sm:$0xff]
        %v557 = vld [vmem:[%s549 + $0x38] sm:$0xff]
        %v559 = vsel %vm360, %v547, 0
        %v562 = vsel %vm360, %v548, 0
        %564 = vmatprep.subr.mxu0 0.0
        %565 = vmatpush1.msra.mxu0 %v550
        %566 = vmatprep.subr.mxu0 0.0
        %567 = vmatpush1.msra.mxu0 %v551
        %568 = vmatprep.subr.mxu0 0.0
        %569 = vmatpush1.msra.mxu0 %v552
        %570 = vmatprep.subr.mxu0 0.0
        %571 = vmatpush1.msra.mxu0 %v553
        %572 = vmatprep.subr.mxu0 0.0
        %573 = vmatpush1.msra.mxu0 %v554
        %574 = vmatprep.subr.mxu0 0.0
        %575 = vmatpush1.msra.mxu0 %v555
        %576 = vmatprep.subr.mxu0 0.0
        %577 = vmatpush1.msra.mxu0 %v556
        %578 = vmatprep.subr.mxu0 0.0
        %579 = vmatpush1.msra.mxu0 %v557
        %580 = vmatprep.subr.mxu0 0.0
        %581 = vmatpush1.msra.mxu0 0.0
        %582 = vmatprep.subr.mxu0 0.0
        %583 = vmatpush1.msra.mxu0 0.0
        %584 = vmatprep.subr.mxu0 0.0
        %585 = vmatpush1.msra.mxu0 0.0
        %586 = vmatprep.subr.mxu0 0.0
        %587 = vmatpush1.msra.mxu0 0.0
        %588 = vmatprep.subr.mxu0 0.0
        %589 = vmatpush1.msra.mxu0 0.0
        %590 = vmatprep.subr.mxu0 0.0
        %591 = vmatpush1.msra.mxu0 0.0
        %592 = vmatprep.subr.mxu0 0.0
        %593 = vmatpush1.msra.mxu0 0.0
        %594 = vmatprep.subr.mxu0 0.0
        %595 = vmatpush1.msra.mxu0 0.0
        %596 = vmatprep.subr.mxu0 0.0
        %597 = vmatpush1.msra.mxu0 0.0
        %598 = vmatprep.subr.mxu0 0.0
        %599 = vmatpush1.msra.mxu0 0.0
        %600 = vmatprep.subr.mxu0 0.0
        %601 = vmatpush1.msra.mxu0 0.0
        %602 = vmatprep.subr.mxu0 0.0
        %603 = vmatpush1.msra.mxu0 0.0
        %604 = vmatprep.subr.mxu0 0.0
        %605 = vmatpush1.msra.mxu0 0.0
        %606 = vmatprep.subr.mxu0 0.0
        %607 = vmatpush1.msra.mxu0 0.0
        %608 = vmatprep.subr.mxu0 0.0
        %609 = vmatpush1.msra.mxu0 0.0
        %610 = vmatprep.subr.mxu0 0.0
        %611 = vmatpush1.msra.mxu0 0.0
        %612 = vmatprep.subr.mxu0 0.0
        %613 = vmatpush1.msra.mxu0 0.0
        %614 = vmatprep.subr.mxu0 0.0
        %615 = vmatpush1.msra.mxu0 0.0
        %616 = vmatprep.subr.mxu0 0.0
        %617 = vmatpush1.msra.mxu0 0.0
        %618 = vmatprep.subr.mxu0 0.0
        %619 = vmatpush1.msra.mxu0 0.0
        %620 = vmatprep.subr.mxu0 0.0
        %621 = vmatpush1.msra.mxu0 0.0
        %622 = vmatprep.subr.mxu0 0.0
        %623 = vmatpush1.msra.mxu0 0.0
        %624 = vmatprep.subr.mxu0 0.0
        %625 = vmatpush1.msra.mxu0 0.0
        %626 = vmatprep.subr.mxu0 0.0
        %627 = vmatpush1.msra.mxu0 0.0
        %628 = vmatprep.mubr.f32.mxu0 0.0
        %629 = vmatmul.mubr.f32.gmra.mrb[0].mxu0 %v559
        %v630 = vpop.f32.mrb[0].mxu0
        %v631 = vadd.f32 0.0, %v630
        %v632 = vpop.f32.mrb[0].mxu0
        %633 = vmatprep.mubr.f32.mxu0 0.0
        %634 = vmatmul.mubr.f32.gmra.mrb[0].mxu0 %v562
        %v635 = vpop.f32.mrb[0].mxu0
        %v636 = vadd.f32 0.0, %v635
        %v637 = vpop.f32.mrb[0].mxu0
        %638 = vdwg.mxu0
        %v639 = vadd.f32 %v539, %v631
        %v640 = vadd.f32 %v544, %v636
        %v642 = vlaneseq
        %v643 = vshrl.u32 %v642, 7
        %v644 = vsub.s32 0, %v643
        %v645 = vrot.slane %v363, %v644
        %v647 = vadd.f32 %v639, %v645
        %v648 = vadd.f32 %v640, %v645
        %v649 = vmax.f32 %v647, 0.0
        %v650 = vmax.f32 %v648, 0.0
        %651 = vst.msk [vmem:[#allocation2 + $0x1] sm:$0xff] %vm360, %v649
        %652 = vst.msk [vmem:[#allocation2 + $0x9] sm:$0xff] %vm360, %v650
        %v653 = vld [vmem:[%s6] sm:$0x1]
        %v654 = vld [vmem:[#allocation2] sm:$0xff]
        %v655 = vld [vmem:[#allocation2 + $0x8] sm:$0xff]
        %v656 = vld [vmem:[#allocation9] sm:$0xff]
        %v657 = vld [vmem:[#allocation9 + $0x8] sm:$0xff]
        %v658 = vld [vmem:[#allocation9 + $0x10] sm:$0xff]
        %v659 = vld [vmem:[#allocation9 + $0x18] sm:$0xff]
        %v660 = vld [vmem:[#allocation9 + $0x20] sm:$0xff]
        %v661 = vld [vmem:[#allocation9 + $0x28] sm:$0xff]
        %v662 = vld [vmem:[#allocation9 + $0x30] sm:$0xff]
        %v663 = vld [vmem:[#allocation9 + $0x38] sm:$0xff]
        %v664 = vld [vmem:[#allocation2 + $0x1] sm:$0xff]
        %v665 = vld [vmem:[#allocation2 + $0x9] sm:$0xff]
        %s666 = scalar_lea.vmem [#allocation9], 64
        %v667 = vld [vmem:[%s666] sm:$0xff]
        %v668 = vld [vmem:[%s666 + $0x8] sm:$0xff]
        %v669 = vld [vmem:[%s666 + $0x10] sm:$0xff]
        %v670 = vld [vmem:[%s666 + $0x18] sm:$0xff]
        %v671 = vld [vmem:[%s666 + $0x20] sm:$0xff]
        %v672 = vld [vmem:[%s666 + $0x28] sm:$0xff]
        %v673 = vld [vmem:[%s666 + $0x30] sm:$0xff]
        %v674 = vld [vmem:[%s666 + $0x38] sm:$0xff]
        %v676 = vsel %vm360, %v664, 0
        %v679 = vsel %vm360, %v665, 0
        %681 = vmatprep.subr.mxu0 0.0
        %682 = vmatpush1.msra.mxu0 %v667
        %683 = vmatprep.subr.mxu0 0.0
        %684 = vmatpush1.msra.mxu0 %v668
        %685 = vmatprep.subr.mxu0 0.0
        %686 = vmatpush1.msra.mxu0 %v669
        %687 = vmatprep.subr.mxu0 0.0
        %688 = vmatpush1.msra.mxu0 %v670
        %689 = vmatprep.subr.mxu0 0.0
        %690 = vmatpush1.msra.mxu0 %v671
        %691 = vmatprep.subr.mxu0 0.0
        %692 = vmatpush1.msra.mxu0 %v672
        %693 = vmatprep.subr.mxu0 0.0
        %694 = vmatpush1.msra.mxu0 %v673
        %695 = vmatprep.subr.mxu0 0.0
        %696 = vmatpush1.msra.mxu0 %v674
        %697 = vmatprep.subr.mxu0 0.0
        %698 = vmatpush1.msra.mxu0 0.0
        %699 = vmatprep.subr.mxu0 0.0
        %700 = vmatpush1.msra.mxu0 0.0
        %701 = vmatprep.subr.mxu0 0.0
        %702 = vmatpush1.msra.mxu0 0.0
        %703 = vmatprep.subr.mxu0 0.0
        %704 = vmatpush1.msra.mxu0 0.0
        %705 = vmatprep.subr.mxu0 0.0
        %706 = vmatpush1.msra.mxu0 0.0
        %707 = vmatprep.subr.mxu0 0.0
        %708 = vmatpush1.msra.mxu0 0.0
        %709 = vmatprep.subr.mxu0 0.0
        %710 = vmatpush1.msra.mxu0 0.0
        %711 = vmatprep.subr.mxu0 0.0
        %712 = vmatpush1.msra.mxu0 0.0
        %713 = vmatprep.subr.mxu0 0.0
        %714 = vmatpush1.msra.mxu0 0.0
        %715 = vmatprep.subr.mxu0 0.0
        %716 = vmatpush1.msra.mxu0 0.0
        %717 = vmatprep.subr.mxu0 0.0
        %718 = vmatpush1.msra.mxu0 0.0
        %719 = vmatprep.subr.mxu0 0.0
        %720 = vmatpush1.msra.mxu0 0.0
        %721 = vmatprep.subr.mxu0 0.0
        %722 = vmatpush1.msra.mxu0 0.0
        %723 = vmatprep.subr.mxu0 0.0
        %724 = vmatpush1.msra.mxu0 0.0
        %725 = vmatprep.subr.mxu0 0.0
        %726 = vmatpush1.msra.mxu0 0.0
        %727 = vmatprep.subr.mxu0 0.0
        %728 = vmatpush1.msra.mxu0 0.0
        %729 = vmatprep.subr.mxu0 0.0
        %730 = vmatpush1.msra.mxu0 0.0
        %731 = vmatprep.subr.mxu0 0.0
        %732 = vmatpush1.msra.mxu0 0.0
        %733 = vmatprep.subr.mxu0 0.0
        %734 = vmatpush1.msra.mxu0 0.0
        %735 = vmatprep.subr.mxu0 0.0
        %736 = vmatpush1.msra.mxu0 0.0
        %737 = vmatprep.subr.mxu0 0.0
        %738 = vmatpush1.msra.mxu0 0.0
        %739 = vmatprep.subr.mxu0 0.0
        %740 = vmatpush1.msra.mxu0 0.0
        %741 = vmatprep.subr.mxu0 0.0
        %742 = vmatpush1.msra.mxu0 0.0
        %743 = vmatprep.subr.mxu0 0.0
        %744 = vmatpush1.msra.mxu0 0.0
        %745 = vmatprep.mubr.f32.mxu0 0.0
        %746 = vmatmul.mubr.f32.gmra.mrb[0].mxu0 %v676
        %v747 = vpop.f32.mrb[0].mxu0
        %v748 = vadd.f32 0.0, %v747
        %v749 = vpop.f32.mrb[0].mxu0
        %750 = vmatprep.mubr.f32.mxu0 0.0
        %751 = vmatmul.mubr.f32.gmra.mrb[0].mxu0 %v679
        %v752 = vpop.f32.mrb[0].mxu0
        %v753 = vadd.f32 0.0, %v752
        %v754 = vpop.f32.mrb[0].mxu0
        %755 = vdwg.mxu0
        %v757 = vsel %vm360, %v654, 0
        %v760 = vsel %vm360, %v655, 0
        %762 = vmatprep.subr.mxu0 0.0
        %763 = vmatpush1.msra.mxu0 %v656
        %764 = vmatprep.subr.mxu0 0.0
        %765 = vmatpush1.msra.mxu0 %v657
        %766 = vmatprep.subr.mxu0 0.0
        %767 = vmatpush1.msra.mxu0 %v658
        %768 = vmatprep.subr.mxu0 0.0
        %769 = vmatpush1.msra.mxu0 %v659
        %770 = vmatprep.subr.mxu0 0.0
        %771 = vmatpush1.msra.mxu0 %v660
        %772 = vmatprep.subr.mxu0 0.0
        %773 = vmatpush1.msra.mxu0 %v661
        %774 = vmatprep.subr.mxu0 0.0
        %775 = vmatpush1.msra.mxu0 %v662
        %776 = vmatprep.subr.mxu0 0.0
        %777 = vmatpush1.msra.mxu0 %v663
        %778 = vmatprep.subr.mxu0 0.0
        %779 = vmatpush1.msra.mxu0 0.0
        %780 = vmatprep.subr.mxu0 0.0
        %781 = vmatpush1.msra.mxu0 0.0
        %782 = vmatprep.subr.mxu0 0.0
        %783 = vmatpush1.msra.mxu0 0.0
        %784 = vmatprep.subr.mxu0 0.0
        %785 = vmatpush1.msra.mxu0 0.0
        %786 = vmatprep.subr.mxu0 0.0
        %787 = vmatpush1.msra.mxu0 0.0
        %788 = vmatprep.subr.mxu0 0.0
        %789 = vmatpush1.msra.mxu0 0.0
        %790 = vmatprep.subr.mxu0 0.0
        %791 = vmatpush1.msra.mxu0 0.0
        %792 = vmatprep.subr.mxu0 0.0
        %793 = vmatpush1.msra.mxu0 0.0
        %794 = vmatprep.subr.mxu0 0.0
        %795 = vmatpush1.msra.mxu0 0.0
        %796 = vmatprep.subr.mxu0 0.0
        %797 = vmatpush1.msra.mxu0 0.0
        %798 = vmatprep.subr.mxu0 0.0
        %799 = vmatpush1.msra.mxu0 0.0
        %800 = vmatprep.subr.mxu0 0.0
        %801 = vmatpush1.msra.mxu0 0.0
        %802 = vmatprep.subr.mxu0 0.0
        %803 = vmatpush1.msra.mxu0 0.0
        %804 = vmatprep.subr.mxu0 0.0
        %805 = vmatpush1.msra.mxu0 0.0
        %806 = vmatprep.subr.mxu0 0.0
        %807 = vmatpush1.msra.mxu0 0.0
        %808 = vmatprep.subr.mxu0 0.0
        %809 = vmatpush1.msra.mxu0 0.0
        %810 = vmatprep.subr.mxu0 0.0
        %811 = vmatpush1.msra.mxu0 0.0
        %812 = vmatprep.subr.mxu0 0.0
        %813 = vmatpush1.msra.mxu0 0.0
        %814 = vmatprep.subr.mxu0 0.0
        %815 = vmatpush1.msra.mxu0 0.0
        %816 = vmatprep.subr.mxu0 0.0
        %817 = vmatpush1.msra.mxu0 0.0
        %818 = vmatprep.subr.mxu0 0.0
        %819 = vmatpush1.msra.mxu0 0.0
        %820 = vmatprep.subr.mxu0 0.0
        %821 = vmatpush1.msra.mxu0 0.0
        %822 = vmatprep.subr.mxu0 0.0
        %823 = vmatpush1.msra.mxu0 0.0
        %824 = vmatprep.subr.mxu0 0.0
        %825 = vmatpush1.msra.mxu0 0.0
        %826 = vmatprep.mubr.f32.mxu0 0.0
        %827 = vmatmul.mubr.f32.gmra.mrb[0].mxu0 %v757
        %v828 = vpop.f32.mrb[0].mxu0
        %v829 = vadd.f32 %v748, %v828
        %v830 = vpop.f32.mrb[0].mxu0
        %831 = vmatprep.mubr.f32.mxu0 0.0
        %832 = vmatmul.mubr.f32.gmra.mrb[0].mxu0 %v760
        %v833 = vpop.f32.mrb[0].mxu0
        %v834 = vadd.f32 %v753, %v833
        %v835 = vpop.f32.mrb[0].mxu0
        %836 = vdwg.mxu0
        %v837 = vld [vmem:[#allocation2 + $0x2] sm:$0xff]
        %v838 = vld [vmem:[#allocation2 + $0xa] sm:$0xff]
        %s839 = scalar_lea.vmem [#allocation9], 128
        %v840 = vld [vmem:[%s839] sm:$0xff]
        %v841 = vld [vmem:[%s839 + $0x8] sm:$0xff]
        %v842 = vld [vmem:[%s839 + $0x10] sm:$0xff]
        %v843 = vld [vmem:[%s839 + $0x18] sm:$0xff]
        %v844 = vld [vmem:[%s839 + $0x20] sm:$0xff]
        %v845 = vld [vmem:[%s839 + $0x28] sm:$0xff]
        %v846 = vld [vmem:[%s839 + $0x30] sm:$0xff]
        %v847 = vld [vmem:[%s839 + $0x38] sm:$0xff]
        %v849 = vsel %vm360, %v837, 0
        %v852 = vsel %vm360, %v838, 0
        %854 = vmatprep.subr.mxu0 0.0
        %855 = vmatpush1.msra.mxu0 %v840
        %856 = vmatprep.subr.mxu0 0.0
        %857 = vmatpush1.msra.mxu0 %v841
        %858 = vmatprep.subr.mxu0 0.0
        %859 = vmatpush1.msra.mxu0 %v842
        %860 = vmatprep.subr.mxu0 0.0
        %861 = vmatpush1.msra.mxu0 %v843
        %862 = vmatprep.subr.mxu0 0.0
        %863 = vmatpush1.msra.mxu0 %v844
        %864 = vmatprep.subr.mxu0 0.0
        %865 = vmatpush1.msra.mxu0 %v845
        %866 = vmatprep.subr.mxu0 0.0
        %867 = vmatpush1.msra.mxu0 %v846
        %868 = vmatprep.subr.mxu0 0.0
        %869 = vmatpush1.msra.mxu0 %v847
        %870 = vmatprep.subr.mxu0 0.0
        %871 = vmatpush1.msra.mxu0 0.0
        %872 = vmatprep.subr.mxu0 0.0
        %873 = vmatpush1.msra.mxu0 0.0
        %874 = vmatprep.subr.mxu0 0.0
        %875 = vmatpush1.msra.mxu0 0.0
        %876 = vmatprep.subr.mxu0 0.0
        %877 = vmatpush1.msra.mxu0 0.0
        %878 = vmatprep.subr.mxu0 0.0
        %879 = vmatpush1.msra.mxu0 0.0
        %880 = vmatprep.subr.mxu0 0.0
        %881 = vmatpush1.msra.mxu0 0.0
        %882 = vmatprep.subr.mxu0 0.0
        %883 = vmatpush1.msra.mxu0 0.0
        %884 = vmatprep.subr.mxu0 0.0
        %885 = vmatpush1.msra.mxu0 0.0
        %886 = vmatprep.subr.mxu0 0.0
        %887 = vmatpush1.msra.mxu0 0.0
        %888 = vmatprep.subr.mxu0 0.0
        %889 = vmatpush1.msra.mxu0 0.0
        %890 = vmatprep.subr.mxu0 0.0
        %891 = vmatpush1.msra.mxu0 0.0
        %892 = vmatprep.subr.mxu0 0.0
        %893 = vmatpush1.msra.mxu0 0.0
        %894 = vmatprep.subr.mxu0 0.0
        %895 = vmatpush1.msra.mxu0 0.0
        %896 = vmatprep.subr.mxu0 0.0
        %897 = vmatpush1.msra.mxu0 0.0
        %898 = vmatprep.subr.mxu0 0.0
        %899 = vmatpush1.msra.mxu0 0.0
        %900 = vmatprep.subr.mxu0 0.0
        %901 = vmatpush1.msra.mxu0 0.0
        %902 = vmatprep.subr.mxu0 0.0
        %903 = vmatpush1.msra.mxu0 0.0
        %904 = vmatprep.subr.mxu0 0.0
        %905 = vmatpush1.msra.mxu0 0.0
        %906 = vmatprep.subr.mxu0 0.0
        %907 = vmatpush1.msra.mxu0 0.0
        %908 = vmatprep.subr.mxu0 0.0
        %909 = vmatpush1.msra.mxu0 0.0
        %910 = vmatprep.subr.mxu0 0.0
        %911 = vmatpush1.msra.mxu0 0.0
        %912 = vmatprep.subr.mxu0 0.0
        %913 = vmatpush1.msra.mxu0 0.0
        %914 = vmatprep.subr.mxu0 0.0
        %915 = vmatpush1.msra.mxu0 0.0
        %916 = vmatprep.subr.mxu0 0.0
        %917 = vmatpush1.msra.mxu0 0.0
        %918 = vmatprep.mubr.f32.mxu0 0.0
        %919 = vmatmul.mubr.f32.gmra.mrb[0].mxu0 %v849
        %v920 = vpop.f32.mrb[0].mxu0
        %v921 = vadd.f32 0.0, %v920
        %v922 = vpop.f32.mrb[0].mxu0
        %923 = vmatprep.mubr.f32.mxu0 0.0
        %924 = vmatmul.mubr.f32.gmra.mrb[0].mxu0 %v852
        %v925 = vpop.f32.mrb[0].mxu0
        %v926 = vadd.f32 0.0, %v925
        %v927 = vpop.f32.mrb[0].mxu0
        %928 = vdwg.mxu0
        %v929 = vadd.f32 %v829, %v921
        %v930 = vadd.f32 %v834, %v926
        %v932 = vlaneseq
        %v933 = vshrl.u32 %v932, 7
        %v934 = vsub.s32 0, %v933
        %v935 = vrot.slane %v653, %v934
        %v937 = vadd.f32 %v929, %v935
        %v938 = vadd.f32 %v930, %v935
        %939 = vst [vmem:[#allocation3] sm:$0xff] %v937
        %940 = vst [vmem:[#allocation3 + $0x8] sm:$0xff] %v938
        %v941 = vld [vmem:[#allocation3] ss:$2 sm:$0xff]
        %s942 = scalar_lea.vmem [#allocation3], 1
        %v943 = vld [vmem:[%s942] ss:$2 sm:$0xff]
        %v944 = vlaneseq
        %v945 = vshrl.u32 %v944, 7
        %vm946 = vcmp.eq.s32.totalorder %v945, 0
        %v947 = vrot.slane %v943, 7
        %v948 = vsel %vm946, -1e+30, %v947
        %v949 = vmax.f32 %v948, %v941
        %v950 = vmax.f32 %v949, %v943
        %v951 = vlaneseq
        %v952 = vand.u32 %v951, 127
        %vm953 = vcmp.lt.s32.totalorder %v952, 8
        %954 = vrot.lane.b32.xlu0 %v950, 8
        %v955 = vpop.permute.xlu0 %954
        %v956 = vsel %vm953, -1e+30, %v955
        %vm957 = vcmp.ge.s32.totalorder %v952, 120
        %958 = vrot.lane.b32.xlu0 %v950, 120
        %v959 = vpop.permute.xlu0 %958
        %v960 = vsel %vm957, -1e+30, %v959
        %v961 = vmax.f32 %v956, %v950
        %v962 = vmax.f32 %v961, %v960
        %v963 = vld [vmem:[%s7] sm:$0xff]
        %v964 = vld [vmem:[%s7 + $0x8] sm:$0xff]
        %v965 = vld [vmem:[%s7 + $0x10] sm:$0xff]
        %v966 = vld [vmem:[%s7 + $0x18] sm:$0xff]
        %v967 = vld [vmem:[%s7 + $0x20] sm:$0xff]
        %v968 = vld [vmem:[%s7 + $0x28] sm:$0xff]
        %v969 = vld [vmem:[%s7 + $0x30] sm:$0xff]
        %v970 = vld [vmem:[%s7 + $0x38] sm:$0xff]
        %v971 = vld [vmem:[%s7 + $0x40] sm:$0xff]
        %v972 = vld [vmem:[%s7 + $0x48] sm:$0xff]
        %v973 = vld [vmem:[%s7 + $0x50] sm:$0xff]
        %v974 = vld [vmem:[%s7 + $0x58] sm:$0xff]
        %v975 = vld [vmem:[%s7 + $0x60] sm:$0xff]
        %v976 = vld [vmem:[%s7 + $0x68] sm:$0xff]
        %v977 = vld [vmem:[%s7 + $0x70] sm:$0xff]
        %v978 = vld [vmem:[%s7 + $0x78] sm:$0xff]
        %979 = vmatprep.subr.mxu0 0.0
        %980 = vmatpush1.msra.mxu0 %v963
        %981 = vmatprep.subr.mxu0 0.0
        %982 = vmatpush1.msra.mxu0 %v964
        %983 = vmatprep.subr.mxu0 0.0
        %984 = vmatpush1.msra.mxu0 %v965
        %985 = vmatprep.subr.mxu0 0.0
        %986 = vmatpush1.msra.mxu0 %v966
        %987 = vmatprep.subr.mxu0 0.0
        %988 = vmatpush1.msra.mxu0 %v967
        %989 = vmatprep.subr.mxu0 0.0
        %990 = vmatpush1.msra.mxu0 %v968
        %991 = vmatprep.subr.mxu0 0.0
        %992 = vmatpush1.msra.mxu0 %v969
        %993 = vmatprep.subr.mxu0 0.0
        %994 = vmatpush1.msra.mxu0 %v970
        %995 = vmatprep.subr.mxu0 0.0
        %996 = vmatpush1.msra.mxu0 %v971
        %997 = vmatprep.subr.mxu0 0.0
        %998 = vmatpush1.msra.mxu0 %v972
        %999 = vmatprep.subr.mxu0 0.0
        %1000 = vmatpush1.msra.mxu0 %v973
        %1001 = vmatprep.subr.mxu0 0.0
        %1002 = vmatpush1.msra.mxu0 %v974
        %1003 = vmatprep.subr.mxu0 0.0
        %1004 = vmatpush1.msra.mxu0 %v975
        %1005 = vmatprep.subr.mxu0 0.0
        %1006 = vmatpush1.msra.mxu0 %v976
        %1007 = vmatprep.subr.mxu0 0.0
        %1008 = vmatpush1.msra.mxu0 %v977
        %1009 = vmatprep.subr.mxu0 0.0
        %1010 = vmatpush1.msra.mxu0 %v978
        %1011 = vmatprep.subr.mxu0 0.0
        %1012 = vmatpush1.msra.mxu0 0.0
        %1013 = vmatprep.subr.mxu0 0.0
        %1014 = vmatpush1.msra.mxu0 0.0
        %1015 = vmatprep.subr.mxu0 0.0
        %1016 = vmatpush1.msra.mxu0 0.0
        %1017 = vmatprep.subr.mxu0 0.0
        %1018 = vmatpush1.msra.mxu0 0.0
        %1019 = vmatprep.subr.mxu0 0.0
        %1020 = vmatpush1.msra.mxu0 0.0
        %1021 = vmatprep.subr.mxu0 0.0
        %1022 = vmatpush1.msra.mxu0 0.0
        %1023 = vmatprep.subr.mxu0 0.0
        %1024 = vmatpush1.msra.mxu0 0.0
        %1025 = vmatprep.subr.mxu0 0.0
        %1026 = vmatpush1.msra.mxu0 0.0
        %1027 = vmatprep.subr.mxu0 0.0
        %1028 = vmatpush1.msra.mxu0 0.0
        %1029 = vmatprep.subr.mxu0 0.0
        %1030 = vmatpush1.msra.mxu0 0.0
        %1031 = vmatprep.subr.mxu0 0.0
        %1032 = vmatpush1.msra.mxu0 0.0
        %1033 = vmatprep.subr.mxu0 0.0
        %1034 = vmatpush1.msra.mxu0 0.0
        %1035 = vmatprep.subr.mxu0 0.0
        %1036 = vmatpush1.msra.mxu0 0.0
        %1037 = vmatprep.subr.mxu0 0.0
        %1038 = vmatpush1.msra.mxu0 0.0
        %1039 = vmatprep.subr.mxu0 0.0
        %1040 = vmatpush1.msra.mxu0 0.0
        %1041 = vmatprep.subr.mxu0 0.0
        %1042 = vmatpush1.msra.mxu0 0.0
        %1043 = vmatprep.mubr.f32.mxu0 0.0
        %1044 = vmatmul.mubr.f32.gmra.mrb[0].mxu0 %v962
        %v1045 = vpop.f32.mrb[0].mxu0
        %v1046 = vadd.f32 0.0, %v1045
        %v1047 = vpop.f32.mrb[0].mxu0
        %1048 = vdwg.mxu0
        %v1049 = vld [vmem:[%s312] ss:$2 sm:$0xff]
        %v1050 = vld [vmem:[#allocation7] sm:$0xff]
        %v1051 = vld [vmem:[#allocation7 + $0x8] sm:$0xff]
        %v1052 = vld [vmem:[#allocation7 + $0x10] sm:$0xff]
        %v1053 = vld [vmem:[#allocation7 + $0x18] sm:$0xff]
        %v1054 = vld [vmem:[#allocation7 + $0x20] sm:$0xff]
        %v1055 = vld [vmem:[#allocation7 + $0x28] sm:$0xff]
        %v1056 = vld [vmem:[#allocation7 + $0x30] sm:$0xff]
        %v1057 = vld [vmem:[#allocation7 + $0x38] sm:$0xff]
        %v1058 = vld [vmem:[%s2] sm:$0x1]
        %v1060 = vlaneseq
        %v1061 = vshrl.u32 %v1060, 7
        %v1062 = vsub.s32 0, %v1061
        %v1063 = vrot.slane %v1058, %v1062
        %v1066 = vsel %vm360, %v1049, 0
        %1068 = vmatprep.subr.mxu0 0.0
        %1069 = vmatpush1.msra.mxu0 %v1050
        %1070 = vmatprep.subr.mxu0 0.0
        %1071 = vmatpush1.msra.mxu0 %v1051
        %1072 = vmatprep.subr.mxu0 0.0
        %1073 = vmatpush1.msra.mxu0 %v1052
        %1074 = vmatprep.subr.mxu0 0.0
        %1075 = vmatpush1.msra.mxu0 %v1053
        %1076 = vmatprep.subr.mxu0 0.0
        %1077 = vmatpush1.msra.mxu0 %v1054
        %1078 = vmatprep.subr.mxu0 0.0
        %1079 = vmatpush1.msra.mxu0 %v1055
        %1080 = vmatprep.subr.mxu0 0.0
        %1081 = vmatpush1.msra.mxu0 %v1056
        %1082 = vmatprep.subr.mxu0 0.0
        %1083 = vmatpush1.msra.mxu0 %v1057
        %1084 = vmatprep.subr.mxu0 0.0
        %1085 = vmatpush1.msra.mxu0 0.0
        %1086 = vmatprep.subr.mxu0 0.0
        %1087 = vmatpush1.msra.mxu0 0.0
        %1088 = vmatprep.subr.mxu0 0.0
        %1089 = vmatpush1.msra.mxu0 0.0
        %1090 = vmatprep.subr.mxu0 0.0
        %1091 = vmatpush1.msra.mxu0 0.0
        %1092 = vmatprep.subr.mxu0 0.0
        %1093 = vmatpush1.msra.mxu0 0.0
        %1094 = vmatprep.subr.mxu0 0.0
        %1095 = vmatpush1.msra.mxu0 0.0
        %1096 = vmatprep.subr.mxu0 0.0
        %1097 = vmatpush1.msra.mxu0 0.0
        %1098 = vmatprep.subr.mxu0 0.0
        %1099 = vmatpush1.msra.mxu0 0.0
        %1100 = vmatprep.subr.mxu0 0.0
        %1101 = vmatpush1.msra.mxu0 0.0
        %1102 = vmatprep.subr.mxu0 0.0
        %1103 = vmatpush1.msra.mxu0 0.0
        %1104 = vmatprep.subr.mxu0 0.0
        %1105 = vmatpush1.msra.mxu0 0.0
        %1106 = vmatprep.subr.mxu0 0.0
        %1107 = vmatpush1.msra.mxu0 0.0
        %1108 = vmatprep.subr.mxu0 0.0
        %1109 = vmatpush1.msra.mxu0 0.0
        %1110 = vmatprep.subr.mxu0 0.0
        %1111 = vmatpush1.msra.mxu0 0.0
        %1112 = vmatprep.subr.mxu0 0.0
        %1113 = vmatpush1.msra.mxu0 0.0
        %1114 = vmatprep.subr.mxu0 0.0
        %1115 = vmatpush1.msra.mxu0 0.0
        %1116 = vmatprep.subr.mxu0 0.0
        %1117 = vmatpush1.msra.mxu0 0.0
        %1118 = vmatprep.subr.mxu0 0.0
        %1119 = vmatpush1.msra.mxu0 0.0
        %1120 = vmatprep.subr.mxu0 0.0
        %1121 = vmatpush1.msra.mxu0 0.0
        %1122 = vmatprep.subr.mxu0 0.0
        %1123 = vmatpush1.msra.mxu0 0.0
        %1124 = vmatprep.subr.mxu0 0.0
        %1125 = vmatpush1.msra.mxu0 0.0
        %1126 = vmatprep.subr.mxu0 0.0
        %1127 = vmatpush1.msra.mxu0 0.0
        %1128 = vmatprep.subr.mxu0 0.0
        %1129 = vmatpush1.msra.mxu0 0.0
        %1130 = vmatprep.subr.mxu0 0.0
        %1131 = vmatpush1.msra.mxu0 0.0
        %1132 = vmatprep.mubr.f32.mxu0 0.0
        %1133 = vmatmul.mubr.f32.gmra.mrb[0].mxu0 %v1066
        %v1134 = vpop.f32.mrb[0].mxu0
        %v1135 = vadd.f32 %v1063, %v1134
        %v1136 = vpop.f32.mrb[0].mxu0
        %1137 = vdwg.mxu0
        %v1138 = vadd.f32 %v1135, %v1046
        %1139 = vst.msk [vmem:[%s352] sm:$0xff] %vm360, %v1138
        %s1140 = sand.u32 %s207, 1
        %s1141 = scalar_lea.sflag [#allocation6], %s1140
        %s1142 = sand.u32 %s207, 1
        %s1143 = smul.addr %s1142, 8
        %s1144 = scalar_lea.vmem [#allocation10], %s1143
        // Predicated region
        $region65: #{tpu_custom_call.1} parent=51 // pred_check
          %p1145 = pneg %p217
        $region66: #{tpu_custom_call.1} parent=51 // pred_check_branch
          %1147 = sbr.rel (%p1145) target = $region68
        $region67: #{tpu_custom_call.1} parent=51 // pred_region
          %s1149 = ssub.s32 128, 128
          %1150 = vsyncadd %s1141, %s1149
          %s1151 = smul.addr %s26, 128
          %s1152 = scalar_lea.hbm %s8, %s1151
          %s1154 = sshll.u32 %s1144, 4
          %s1155 = int_to_ptr.vmem [resolvable:$true] %s1154
          %1157 = dma.vmem_to_hbm [thread:$0]  %s1155, 128, %s1152, %s1141
        $region68: #{tpu_custom_call.1} parent=51 // pred_fallthru
          _
      $region52: #{tpu_custom_call.1} parent=5 // pred_fallthru
        _
      %p1158 = scmp.le.s32.totalorder 2, %s21
      // Predicated region
      $region69: #{tpu_custom_call.1} parent=5 // pred_check
        %p1159 = pneg %p1158
      $region70: #{tpu_custom_call.1} parent=5 // pred_check_branch
        %1161 = sbr.rel (%p1159) target = $region72
      $region71: #{tpu_custom_call.1} parent=5 // pred_region
        %s1162 = ssub.s32 %s21, 2
        // Predicated region
        $region73: #{tpu_custom_call.1} parent=71 // pred_check
          %p1163 = pneg %p223
        $region74: #{tpu_custom_call.1} parent=71 // pred_check_branch
          %1165 = sbr.rel (%p1163) target = $region76
        $region75: #{tpu_custom_call.1} parent=71 // pred_region
          %s1166 = sand.u32 %s208, 1
          %s1167 = scalar_lea.sflag [#allocation6], %s1166
          %s1168 = sand.u32 %s208, 1
          %s1169 = smul.addr %s1168, 8
          %s1170 = scalar_lea.vmem [#allocation10], %s1169
          %1171 = dma.done %s1167, 128
        $region76: #{tpu_custom_call.1} parent=71 // pred_fallthru
          _
      $region72: #{tpu_custom_call.1} parent=5 // pred_fallthru
        _
    $region6: #{tpu_custom_call.1} parent=1 // loop_footer
      %s25 = sadd.s32 1, %s21
    $region7: #{tpu_custom_call.1} parent=1 // loop_footer_branch
      %20 = sbr.rel target = $region3
    $region8: #{tpu_custom_call.1} parent=1 // loop_exit
      _
    %1172 = vsyncpa [#allocation5], 1
    %s1173 = scalar_lea.sflag [#allocation5], 1
    %1174 = vsyncpa %s1173, 1
    %1175 = vsyncpa [#allocation8], 1
    %1176 = vsyncpa [#allocation6], 1
    %s1177 = scalar_lea.sflag [#allocation6], 1
    %1178 = vsyncpa %s1177, 1

</llo_original>
